<compile_context>
chip_gen: v5e
topology: v5e:2x2
jax: 0.10.0
libtpu: 0.0.40
codegen_flags: <defaults>
</compile_context>

<pallas_src>
import math

import jax
import jax.numpy as jnp
from jax.experimental import pallas as pl
from jax.experimental.pallas import tpu as pltpu


def _num_tensorcores():
    """Best-effort TensorCores per chip (v7x: 2, v5e/v6e: 1). Safe fallback 1."""
    try:
        kind = (getattr(jax.devices()[0], "device_kind", "") or "").lower()
        if "v7" in kind:
            return 2
    except Exception:
        pass
    return 1


def make_cross_attention_kernel(num_heads, head_dim_red, Dq, Bt, Tq, Tkv, E,
                                compute_dtype, approx_recip):
    scale = 1.0 / math.sqrt(head_dim_red)
    f32 = jnp.float32
    cd = jnp.dtype(compute_dtype)

    def kernel(hs_ref, enc_ref, wq_ref, bq_ref, wk_ref, bk_ref,
               wv_ref, bv_ref, wp_ref, bp_ref, out_ref, o_slab):
        # Flatten the batch tile into the matmul M dimension (free reshape:
        # Tq/Tkv are multiples of the 8-sublane tile).
        hs = hs_ref[...].reshape(Bt * Tq, E)
        enc = enc_ref[...].reshape(Bt * Tkv, E)

        # Conv1D projections (x @ W + b), f32 accumulation. K/V use pre-split
        # weight halves so no lane-offset slicing of the kv matmul result.
        q = jnp.dot(hs, wq_ref[...], preferred_element_type=f32) + bq_ref[...]
        k = jnp.dot(enc, wk_ref[...], preferred_element_type=f32) + bk_ref[...]
        v = jnp.dot(enc, wv_ref[...], preferred_element_type=f32) + bv_ref[...]

        # Fold the 1/sqrt(hd) softmax scale into q; cast to the compute dtype
        # before the per-head slices so relayouts move half the bytes (bf16).
        q = (q * scale).astype(cd)
        k = k.astype(cd)
        v = v.astype(cd)

        q3 = q.reshape(Bt, Tq, Dq)
        k3 = k.reshape(Bt, Tkv, Dq)
        v3 = v.reshape(Bt, Tkv, Dq)

        # Per-head attention, batched over the Bt batch rows via 3-D einsums.
        # Each head's output is staged into the VMEM slab at its static lane
        # offset; the head merge then costs nothing and ONE output-projection
        # matmul (K = Dq) replaces num_heads K=hd matmuls.
        for h in range(num_heads):
            lo = h * head_dim_red
            hi = lo + head_dim_red
            qh = q3[:, :, lo:hi]                      # [Bt, Tq,  hd]
            kh = k3[:, :, lo:hi]                      # [Bt, Tkv, hd]
            vh = v3[:, :, lo:hi]                      # [Bt, Tkv, hd]

            s = jnp.einsum('bqd,bkd->bqk', qh, kh,
                           preferred_element_type=f32)   # [Bt, Tq, Tkv]
            s = s - jnp.max(s, axis=-1, keepdims=True)
            e = jnp.exp(s)
            inv = pl.reciprocal(jnp.sum(e, axis=-1, keepdims=True),
                                approx=approx_recip)
            p = (e * inv).astype(cd)

            oh = jnp.einsum('bqk,bkd->bqd', p, vh,
                            preferred_element_type=f32)  # [Bt, Tq, hd]
            o_slab[:, lo:hi] = oh.reshape(Bt * Tq, head_dim_red).astype(cd)

        # Single output projection over the merged-head slab.
        out = jnp.dot(o_slab[...], wp_ref[...],
                      preferred_element_type=f32) + bp_ref[...]
        out_ref[...] = out.reshape(Bt, Tq, E).astype(out_ref.dtype)

    return kernel


def cross_attention_forward(hidden_states, encoder_hidden_states, params,
                            num_heads, head_dim, reduce_factor,
                            block_b=None, compute_dtype=jnp.bfloat16,
                            approx_reciprocal=None):
    """hidden_states: [B, Tq, E]; encoder_hidden_states: [B, Tkv, E]."""
    B, Tq, E = hidden_states.shape
    _, Tkv, _ = encoder_hidden_states.shape
    head_dim_red = head_dim // reduce_factor
    Dq = E // reduce_factor
    assert num_heads * head_dim_red == Dq

    if block_b is None:
        # Single grid step on 1-TC chips (v5e/v6e); two steps on v7x so the
        # "parallel" axis is sharded across both TensorCores.
        n_tc = _num_tensorcores()
        block_b = B // n_tc if (n_tc > 1 and B % n_tc == 0) else B
    assert B % block_b == 0, "block_b must divide the batch size"

    cd = jnp.dtype(compute_dtype)
    if approx_reciprocal is None:
        approx_reciprocal = bool(cd != jnp.float32)

    wq, bq, wc, bc, wp, bp = params
    # Pre-split the fused c_attn weight/bias into K / V halves (exact, zero
    # kernel cost; avoids slicing the kv matmul result at a non-128 lane).
    wk, wv = wc[:, :Dq], wc[:, Dq:]
    bk, bv = bc[:, :Dq], bc[:, Dq:]

    out_dtype = hidden_states.dtype
    if cd != jnp.float32:
        # bf16 MXU operands (f32 accumulation stays inside the kernel); biases
        # remain f32 for an exact epilogue add.
        hidden_states = hidden_states.astype(cd)
        encoder_hidden_states = encoder_hidden_states.astype(cd)
        wq, wk, wv, wp = (w.astype(cd) for w in (wq, wk, wv, wp))

    kernel = make_cross_attention_kernel(num_heads, head_dim_red, Dq,
                                         block_b, Tq, Tkv, E, cd,
                                         approx_reciprocal)
    full = lambda b: (0, 0)

    return pl.pallas_call(
        kernel,
        out_shape=jax.ShapeDtypeStruct((B, Tq, E), out_dtype),
        grid=(B // block_b,),
        in_specs=[
            pl.BlockSpec((block_b, Tq, E), lambda b: (b, 0, 0)),
            pl.BlockSpec((block_b, Tkv, E), lambda b: (b, 0, 0)),
            pl.BlockSpec((E, Dq), full),     # Wq
            pl.BlockSpec((1, Dq), full),     # bq
            pl.BlockSpec((E, Dq), full),     # Wk (first half of c_attn)
            pl.BlockSpec((1, Dq), full),     # bk
            pl.BlockSpec((E, Dq), full),     # Wv (second half of c_attn)
            pl.BlockSpec((1, Dq), full),     # bv
            pl.BlockSpec((Dq, E), full),     # Wp
            pl.BlockSpec((1, E), full),      # bp
        ],
        out_specs=pl.BlockSpec((block_b, Tq, E), lambda b: (b, 0, 0)),
        scratch_shapes=[pltpu.VMEM((block_b * Tq, Dq), cd)],  # merged-head slab
        compiler_params=pltpu.CompilerParams(
            dimension_semantics=("parallel",),
            # Default scoped limit is fine at these shapes; raise on v5e/v6e
            # (128 MiB physical) when scaling block_b / T / E.
            vmem_limit_bytes=32 * 1024 * 1024),
    )(hidden_states, encoder_hidden_states,
      wq, bq, wk, bk, wv, bv, wp, bp)


def reference_forward(hidden_states, encoder_hidden_states, params,
                      num_heads, head_dim, reduce_factor):
    """Pure-JAX reference mirroring the PyTorch module (eval mode)."""
    wq, bq, wc, bc, wp, bp = params
    B, Tq, E = hidden_states.shape
    _, Tkv, _ = encoder_hidden_states.shape
    hd = head_dim // reduce_factor
    Dq = E // reduce_factor

    q = hidden_states @ wq + bq                      # [B, Tq, Dq]
    kv = encoder_hidden_states @ wc + bc             # [B, Tkv, 2*Dq]
    k, v = kv[..., :Dq], kv[..., Dq:]

    def split_heads(t, T):
        return t.reshape(B, T, num_heads, hd).transpose(0, 2, 1, 3)

    qh = split_heads(q, Tq)
    kh = split_heads(k, Tkv)
    vh = split_heads(v, Tkv)
    s = jnp.einsum('bhqd,bhkd->bhqk', qh, kh) / jnp.sqrt(
        jnp.array(hd, jnp.float32))
    p = jax.nn.softmax(s, axis=-1)
    o = jnp.einsum('bhqk,bhkd->bhqd', p, vh)
    o = o.transpose(0, 2, 1, 3).reshape(B, Tq, Dq)
    return o @ wp + bp


if __name__ == "__main__":
    # Small config consistent with the module's constraints:
    # embed_dim == num_heads * head_dim, reduce_factor divides both.
    B, Tq, Tkv = 8, 8, 16
    embed_dim = 256
    num_heads = 4
    head_dim = 64
    reduce_factor = 4
    Dq = embed_dim // reduce_factor  # 64

    key = jax.random.PRNGKey(0)
    k_hs, k_enc, k_wq, k_bq, k_wc, k_bc, k_wp, k_bp = jax.random.split(key, 8)

    hidden_states = jax.random.normal(k_hs, (B, Tq, embed_dim), jnp.float32)
    encoder_hidden_states = jax.random.normal(k_enc, (B, Tkv, embed_dim),
                                              jnp.float32)

    # Conv1D init (deterministic): weight ~ N(0, 0.02), bias small normal.
    wq = 0.02 * jax.random.normal(k_wq, (embed_dim, Dq), jnp.float32)
    bq = 0.02 * jax.random.normal(k_bq, (1, Dq), jnp.float32)
    wc = 0.02 * jax.random.normal(k_wc, (embed_dim, 2 * Dq), jnp.float32)
    bc = 0.02 * jax.random.normal(k_bc, (1, 2 * Dq), jnp.float32)
    wp = 0.02 * jax.random.normal(k_wp, (Dq, embed_dim), jnp.float32)
    bp = 0.02 * jax.random.normal(k_bp, (1, embed_dim), jnp.float32)
    params = (wq, bq, wc, bc, wp, bp)

    ref = reference_forward(hidden_states, encoder_hidden_states, params,
                            num_heads, head_dim, reduce_factor)

    # f32 path (exact reciprocal, multi-step grid): parity with the reference.
    out = cross_attention_forward(hidden_states, encoder_hidden_states, params,
                                  num_heads, head_dim, reduce_factor,
                                  block_b=4, compute_dtype=jnp.float32)
    out = jax.block_until_ready(out)
    assert out.shape == (B, Tq, embed_dim)
    assert jnp.allclose(out, ref, atol=5e-5, rtol=5e-5), (
        f"f32 max abs err {jnp.max(jnp.abs(out - ref))}")

    # Default fast path: bf16 MXU operands, f32 accumulation, approx recip,
    # block_b sized per generation (grid=1 on v5e/v6e, grid=2 on v7x).
    out_bf16 = cross_attention_forward(hidden_states, encoder_hidden_states,
                                       params, num_heads, head_dim,
                                       reduce_factor)
    out_bf16 = jax.block_until_ready(out_bf16)
    assert out_bf16.shape == (B, Tq, embed_dim)
    assert jnp.allclose(out_bf16.astype(jnp.float32), ref,
                        atol=3e-2, rtol=3e-2), (
        f"bf16 max abs err {jnp.max(jnp.abs(out_bf16.astype(jnp.float32) - ref))}")

    print("KERNEL_OK")
</pallas_src>

<mosaic_0001>
module attributes {stable_mosaic.version = 11 : i64} {
  func.func @kernel(%arg0: i32, %arg1: memref<4x8x256xf32, #tpu.memory_space<vmem>>, %arg2: memref<4x16x256xf32, #tpu.memory_space<vmem>>, %arg3: memref<256x64xf32, #tpu.memory_space<vmem>>, %arg4: memref<1x64xf32, #tpu.memory_space<vmem>>, %arg5: memref<256x64xf32, #tpu.memory_space<vmem>>, %arg6: memref<1x64xf32, #tpu.memory_space<vmem>>, %arg7: memref<256x64xf32, #tpu.memory_space<vmem>>, %arg8: memref<1x64xf32, #tpu.memory_space<vmem>>, %arg9: memref<64x256xf32, #tpu.memory_space<vmem>>, %arg10: memref<1x256xf32, #tpu.memory_space<vmem>>, %arg11: memref<4x8x256xf32, #tpu.memory_space<vmem>>, %arg12: memref<32x64xf32, #tpu.memory_space<vmem>>) attributes {dimension_semantics = [#tpu.dimension_semantics<parallel>], iteration_bounds = array<i64: 2>, scalar_prefetch = 0 : i64, scratch_operands = 1 : i64, tpu.core_type = #tpu.core_type<tc>, window_params = [{transform_indices = @transform_0, window_bounds = array<i64: 4, 8, 256>}, {transform_indices = @transform_1, window_bounds = array<i64: 4, 16, 256>}, {pipeline_mode = #tpu.pipeline_mode<synchronous>, transform_indices = @transform_2, window_bounds = array<i64: 256, 64>}, {pipeline_mode = #tpu.pipeline_mode<synchronous>, transform_indices = @transform_3, window_bounds = array<i64: 1, 64>}, {pipeline_mode = #tpu.pipeline_mode<synchronous>, transform_indices = @transform_4, window_bounds = array<i64: 256, 64>}, {pipeline_mode = #tpu.pipeline_mode<synchronous>, transform_indices = @transform_5, window_bounds = array<i64: 1, 64>}, {pipeline_mode = #tpu.pipeline_mode<synchronous>, transform_indices = @transform_6, window_bounds = array<i64: 256, 64>}, {pipeline_mode = #tpu.pipeline_mode<synchronous>, transform_indices = @transform_7, window_bounds = array<i64: 1, 64>}, {pipeline_mode = #tpu.pipeline_mode<synchronous>, transform_indices = @transform_8, window_bounds = array<i64: 64, 256>}, {pipeline_mode = #tpu.pipeline_mode<synchronous>, transform_indices = @transform_9, window_bounds = array<i64: 1, 256>}, {transform_indices = @transform_10, window_bounds = array<i64: 4, 8, 256>}]} {
    %c0 = arith.constant 0 : index
    %c0_0 = arith.constant 0 : index
    %c0_1 = arith.constant 0 : index
    %0 = vector.load %arg1[%c0, %c0_0, %c0_1] : memref<4x8x256xf32, #tpu.memory_space<vmem>>, vector<4x8x256xf32>
    %1 = vector.shape_cast %0 : vector<4x8x256xf32> to vector<32x256xf32>
    %c0_2 = arith.constant 0 : index
    %c0_3 = arith.constant 0 : index
    %c0_4 = arith.constant 0 : index
    %2 = vector.load %arg2[%c0_2, %c0_3, %c0_4] : memref<4x16x256xf32, #tpu.memory_space<vmem>>, vector<4x16x256xf32>
    %3 = vector.shape_cast %2 : vector<4x16x256xf32> to vector<64x256xf32>
    %c0_5 = arith.constant 0 : index
    %c0_6 = arith.constant 0 : index
    %4 = vector.load %arg3[%c0_5, %c0_6] : memref<256x64xf32, #tpu.memory_space<vmem>>, vector<256x64xf32>
    %cst = arith.constant dense<0.000000e+00> : vector<32x64xf32>
    %5 = tpu.matmul %1, %4, %cst {dimension_numbers = #tpu.dot_dimension_numbers<[1], [0], [0], [1], [0, 0, 1, 1], [], []>} : vector<32x256xf32>, vector<256x64xf32>, vector<32x64xf32> -> vector<32x64xf32>
    %c0_7 = arith.constant 0 : index
    %c0_8 = arith.constant 0 : index
    %6 = vector.load %arg4[%c0_7, %c0_8] : memref<1x64xf32, #tpu.memory_space<vmem>>, vector<1x64xf32>
    %7 = vector.broadcast %6 : vector<1x64xf32> to vector<32x64xf32>
    %8 = arith.addf %5, %7 : vector<32x64xf32>
    %c0_9 = arith.constant 0 : index
    %c0_10 = arith.constant 0 : index
    %9 = vector.load %arg5[%c0_9, %c0_10] : memref<256x64xf32, #tpu.memory_space<vmem>>, vector<256x64xf32>
    %cst_11 = arith.constant dense<0.000000e+00> : vector<64x64xf32>
    %10 = tpu.matmul %3, %9, %cst_11 {dimension_numbers = #tpu.dot_dimension_numbers<[1], [0], [0], [1], [0, 0, 1, 1], [], []>} : vector<64x256xf32>, vector<256x64xf32>, vector<64x64xf32> -> vector<64x64xf32>
    %c0_12 = arith.constant 0 : index
    %c0_13 = arith.constant 0 : index
    %11 = vector.load %arg6[%c0_12, %c0_13] : memref<1x64xf32, #tpu.memory_space<vmem>>, vector<1x64xf32>
    %12 = vector.broadcast %11 : vector<1x64xf32> to vector<64x64xf32>
    %13 = arith.addf %10, %12 : vector<64x64xf32>
    %c0_14 = arith.constant 0 : index
    %c0_15 = arith.constant 0 : index
    %14 = vector.load %arg7[%c0_14, %c0_15] : memref<256x64xf32, #tpu.memory_space<vmem>>, vector<256x64xf32>
    %cst_16 = arith.constant dense<0.000000e+00> : vector<64x64xf32>
    %15 = tpu.matmul %3, %14, %cst_16 {dimension_numbers = #tpu.dot_dimension_numbers<[1], [0], [0], [1], [0, 0, 1, 1], [], []>} : vector<64x256xf32>, vector<256x64xf32>, vector<64x64xf32> -> vector<64x64xf32>
    %c0_17 = arith.constant 0 : index
    %c0_18 = arith.constant 0 : index
    %16 = vector.load %arg8[%c0_17, %c0_18] : memref<1x64xf32, #tpu.memory_space<vmem>>, vector<1x64xf32>
    %17 = vector.broadcast %16 : vector<1x64xf32> to vector<64x64xf32>
    %18 = arith.addf %15, %17 : vector<64x64xf32>
    %cst_19 = arith.constant 2.500000e-01 : f32
    %19 = vector.broadcast %cst_19 : f32 to vector<32x64xf32>
    %20 = arith.mulf %8, %19 : vector<32x64xf32>
    %21 = vector.shape_cast %20 : vector<32x64xf32> to vector<4x8x64xf32>
    %22 = vector.shape_cast %13 : vector<64x64xf32> to vector<4x16x64xf32>
    %23 = vector.shape_cast %18 : vector<64x64xf32> to vector<4x16x64xf32>
    %24 = vector.extract_strided_slice %21 {offsets = [0, 0, 0], sizes = [4, 8, 16], strides = [1, 1, 1]} : vector<4x8x64xf32> to vector<4x8x16xf32>
    %25 = vector.extract_strided_slice %22 {offsets = [0, 0, 0], sizes = [4, 16, 16], strides = [1, 1, 1]} : vector<4x16x64xf32> to vector<4x16x16xf32>
    %26 = vector.extract_strided_slice %23 {offsets = [0, 0, 0], sizes = [4, 16, 16], strides = [1, 1, 1]} : vector<4x16x64xf32> to vector<4x16x16xf32>
    "tpu.trace_start"() <{level = 10 : i32, message = "bqd,bkd->bqk"}> : () -> ()
    %cst_20 = arith.constant dense<0.000000e+00> : vector<4x8x16xf32>
    %27 = tpu.matmul %24, %25, %cst_20 {dimension_numbers = #tpu.dot_dimension_numbers<[2], [2], [1], [1], [0, 0, 0, 1, 1, 1], [0], [0]>} : vector<4x8x16xf32>, vector<4x16x16xf32>, vector<4x8x16xf32> -> vector<4x8x16xf32>
    "tpu.trace_stop"() : () -> ()
    %cst_21 = arith.constant dense<0xFF800000> : vector<4x8xf32>
    %28 = vector.multi_reduction <maximumf>, %27, %cst_21 [2] : vector<4x8x16xf32> to vector<4x8xf32>
    %29 = vector.shape_cast %28 : vector<4x8xf32> to vector<4x8x1xf32>
    %30 = vector.broadcast %29 : vector<4x8x1xf32> to vector<4x8x16xf32>
    %31 = arith.subf %27, %30 : vector<4x8x16xf32>
    %32 = math.exp %31 : vector<4x8x16xf32>
    %cst_22 = arith.constant dense<0.000000e+00> : vector<4x8xf32>
    %33 = vector.multi_reduction <add>, %32, %cst_22 [2] : vector<4x8x16xf32> to vector<4x8xf32>
    %34 = vector.shape_cast %33 : vector<4x8xf32> to vector<4x8x1xf32>
    %35 = tpu.reciprocal %34 : vector<4x8x1xf32> -> vector<4x8x1xf32>
    %36 = vector.broadcast %35 : vector<4x8x1xf32> to vector<4x8x16xf32>
    %37 = arith.mulf %32, %36 : vector<4x8x16xf32>
    "tpu.trace_start"() <{level = 10 : i32, message = "bqk,bkd->bqd"}> : () -> ()
    %cst_23 = arith.constant dense<0.000000e+00> : vector<4x8x16xf32>
    %38 = tpu.matmul %37, %26, %cst_23 {dimension_numbers = #tpu.dot_dimension_numbers<[2], [1], [1], [2], [0, 0, 0, 1, 1, 2], [0], [0]>} : vector<4x8x16xf32>, vector<4x16x16xf32>, vector<4x8x16xf32> -> vector<4x8x16xf32>
    "tpu.trace_stop"() : () -> ()
    %39 = vector.shape_cast %38 : vector<4x8x16xf32> to vector<32x16xf32>
    %c0_24 = arith.constant 0 : index
    %c0_25 = arith.constant 0 : index
    %40 = vector.load %arg12[%c0_24, %c0_25] : memref<32x64xf32, #tpu.memory_space<vmem>>, vector<32x16xf32>
    tpu.vector_store %arg12[%c0_24, %c0_25], %39 {strides = array<i32>} : memref<32x64xf32, #tpu.memory_space<vmem>>, vector<32x16xf32>,
    %41 = vector.extract_strided_slice %21 {offsets = [0, 0, 16], sizes = [4, 8, 16], strides = [1, 1, 1]} : vector<4x8x64xf32> to vector<4x8x16xf32>
    %42 = vector.extract_strided_slice %22 {offsets = [0, 0, 16], sizes = [4, 16, 16], strides = [1, 1, 1]} : vector<4x16x64xf32> to vector<4x16x16xf32>
    %43 = vector.extract_strided_slice %23 {offsets = [0, 0, 16], sizes = [4, 16, 16], strides = [1, 1, 1]} : vector<4x16x64xf32> to vector<4x16x16xf32>
    "tpu.trace_start"() <{level = 10 : i32, message = "bqd,bkd->bqk"}> : () -> ()
    %cst_26 = arith.constant dense<0.000000e+00> : vector<4x8x16xf32>
    %44 = tpu.matmul %41, %42, %cst_26 {dimension_numbers = #tpu.dot_dimension_numbers<[2], [2], [1], [1], [0, 0, 0, 1, 1, 1], [0], [0]>} : vector<4x8x16xf32>, vector<4x16x16xf32>, vector<4x8x16xf32> -> vector<4x8x16xf32>
    "tpu.trace_stop"() : () -> ()
    %cst_27 = arith.constant dense<0xFF800000> : vector<4x8xf32>
    %45 = vector.multi_reduction <maximumf>, %44, %cst_27 [2] : vector<4x8x16xf32> to vector<4x8xf32>
    %46 = vector.shape_cast %45 : vector<4x8xf32> to vector<4x8x1xf32>
    %47 = vector.broadcast %46 : vector<4x8x1xf32> to vector<4x8x16xf32>
    %48 = arith.subf %44, %47 : vector<4x8x16xf32>
    %49 = math.exp %48 : vector<4x8x16xf32>
    %cst_28 = arith.constant dense<0.000000e+00> : vector<4x8xf32>
    %50 = vector.multi_reduction <add>, %49, %cst_28 [2] : vector<4x8x16xf32> to vector<4x8xf32>
    %51 = vector.shape_cast %50 : vector<4x8xf32> to vector<4x8x1xf32>
    %52 = tpu.reciprocal %51 : vector<4x8x1xf32> -> vector<4x8x1xf32>
    %53 = vector.broadcast %52 : vector<4x8x1xf32> to vector<4x8x16xf32>
    %54 = arith.mulf %49, %53 : vector<4x8x16xf32>
    "tpu.trace_start"() <{level = 10 : i32, message = "bqk,bkd->bqd"}> : () -> ()
    %cst_29 = arith.constant dense<0.000000e+00> : vector<4x8x16xf32>
    %55 = tpu.matmul %54, %43, %cst_29 {dimension_numbers = #tpu.dot_dimension_numbers<[2], [1], [1], [2], [0, 0, 0, 1, 1, 2], [0], [0]>} : vector<4x8x16xf32>, vector<4x16x16xf32>, vector<4x8x16xf32> -> vector<4x8x16xf32>
    "tpu.trace_stop"() : () -> ()
    %56 = vector.shape_cast %55 : vector<4x8x16xf32> to vector<32x16xf32>
    %c0_30 = arith.constant 0 : index
    %c16 = arith.constant 16 : index
    %57 = vector.load %arg12[%c0_30, %c16] : memref<32x64xf32, #tpu.memory_space<vmem>>, vector<32x16xf32>
    tpu.vector_store %arg12[%c0_30, %c16], %56 {strides = array<i32>} : memref<32x64xf32, #tpu.memory_space<vmem>>, vector<32x16xf32>,
    %58 = vector.extract_strided_slice %21 {offsets = [0, 0, 32], sizes = [4, 8, 16], strides = [1, 1, 1]} : vector<4x8x64xf32> to vector<4x8x16xf32>
    %59 = vector.extract_strided_slice %22 {offsets = [0, 0, 32], sizes = [4, 16, 16], strides = [1, 1, 1]} : vector<4x16x64xf32> to vector<4x16x16xf32>
    %60 = vector.extract_strided_slice %23 {offsets = [0, 0, 32], sizes = [4, 16, 16], strides = [1, 1, 1]} : vector<4x16x64xf32> to vector<4x16x16xf32>
    "tpu.trace_start"() <{level = 10 : i32, message = "bqd,bkd->bqk"}> : () -> ()
    %cst_31 = arith.constant dense<0.000000e+00> : vector<4x8x16xf32>
    %61 = tpu.matmul %58, %59, %cst_31 {dimension_numbers = #tpu.dot_dimension_numbers<[2], [2], [1], [1], [0, 0, 0, 1, 1, 1], [0], [0]>} : vector<4x8x16xf32>, vector<4x16x16xf32>, vector<4x8x16xf32> -> vector<4x8x16xf32>
    "tpu.trace_stop"() : () -> ()
    %cst_32 = arith.constant dense<0xFF800000> : vector<4x8xf32>
    %62 = vector.multi_reduction <maximumf>, %61, %cst_32 [2] : vector<4x8x16xf32> to vector<4x8xf32>
    %63 = vector.shape_cast %62 : vector<4x8xf32> to vector<4x8x1xf32>
    %64 = vector.broadcast %63 : vector<4x8x1xf32> to vector<4x8x16xf32>
    %65 = arith.subf %61, %64 : vector<4x8x16xf32>
    %66 = math.exp %65 : vector<4x8x16xf32>
    %cst_33 = arith.constant dense<0.000000e+00> : vector<4x8xf32>
    %67 = vector.multi_reduction <add>, %66, %cst_33 [2] : vector<4x8x16xf32> to vector<4x8xf32>
    %68 = vector.shape_cast %67 : vector<4x8xf32> to vector<4x8x1xf32>
    %69 = tpu.reciprocal %68 : vector<4x8x1xf32> -> vector<4x8x1xf32>
    %70 = vector.broadcast %69 : vector<4x8x1xf32> to vector<4x8x16xf32>
    %71 = arith.mulf %66, %70 : vector<4x8x16xf32>
    "tpu.trace_start"() <{level = 10 : i32, message = "bqk,bkd->bqd"}> : () -> ()
    %cst_34 = arith.constant dense<0.000000e+00> : vector<4x8x16xf32>
    %72 = tpu.matmul %71, %60, %cst_34 {dimension_numbers = #tpu.dot_dimension_numbers<[2], [1], [1], [2], [0, 0, 0, 1, 1, 2], [0], [0]>} : vector<4x8x16xf32>, vector<4x16x16xf32>, vector<4x8x16xf32> -> vector<4x8x16xf32>
    "tpu.trace_stop"() : () -> ()
    %73 = vector.shape_cast %72 : vector<4x8x16xf32> to vector<32x16xf32>
    %c0_35 = arith.constant 0 : index
    %c32 = arith.constant 32 : index
    %74 = vector.load %arg12[%c0_35, %c32] : memref<32x64xf32, #tpu.memory_space<vmem>>, vector<32x16xf32>
    tpu.vector_store %arg12[%c0_35, %c32], %73 {strides = array<i32>} : memref<32x64xf32, #tpu.memory_space<vmem>>, vector<32x16xf32>,
    %75 = vector.extract_strided_slice %21 {offsets = [0, 0, 48], sizes = [4, 8, 16], strides = [1, 1, 1]} : vector<4x8x64xf32> to vector<4x8x16xf32>
    %76 = vector.extract_strided_slice %22 {offsets = [0, 0, 48], sizes = [4, 16, 16], strides = [1, 1, 1]} : vector<4x16x64xf32> to vector<4x16x16xf32>
    %77 = vector.extract_strided_slice %23 {offsets = [0, 0, 48], sizes = [4, 16, 16], strides = [1, 1, 1]} : vector<4x16x64xf32> to vector<4x16x16xf32>
    "tpu.trace_start"() <{level = 10 : i32, message = "bqd,bkd->bqk"}> : () -> ()
    %cst_36 = arith.constant dense<0.000000e+00> : vector<4x8x16xf32>
    %78 = tpu.matmul %75, %76, %cst_36 {dimension_numbers = #tpu.dot_dimension_numbers<[2], [2], [1], [1], [0, 0, 0, 1, 1, 1], [0], [0]>} : vector<4x8x16xf32>, vector<4x16x16xf32>, vector<4x8x16xf32> -> vector<4x8x16xf32>
    "tpu.trace_stop"() : () -> ()
    %cst_37 = arith.constant dense<0xFF800000> : vector<4x8xf32>
    %79 = vector.multi_reduction <maximumf>, %78, %cst_37 [2] : vector<4x8x16xf32> to vector<4x8xf32>
    %80 = vector.shape_cast %79 : vector<4x8xf32> to vector<4x8x1xf32>
    %81 = vector.broadcast %80 : vector<4x8x1xf32> to vector<4x8x16xf32>
    %82 = arith.subf %78, %81 : vector<4x8x16xf32>
    %83 = math.exp %82 : vector<4x8x16xf32>
    %cst_38 = arith.constant dense<0.000000e+00> : vector<4x8xf32>
    %84 = vector.multi_reduction <add>, %83, %cst_38 [2] : vector<4x8x16xf32> to vector<4x8xf32>
    %85 = vector.shape_cast %84 : vector<4x8xf32> to vector<4x8x1xf32>
    %86 = tpu.reciprocal %85 : vector<4x8x1xf32> -> vector<4x8x1xf32>
    %87 = vector.broadcast %86 : vector<4x8x1xf32> to vector<4x8x16xf32>
    %88 = arith.mulf %83, %87 : vector<4x8x16xf32>
    "tpu.trace_start"() <{level = 10 : i32, message = "bqk,bkd->bqd"}> : () -> ()
    %cst_39 = arith.constant dense<0.000000e+00> : vector<4x8x16xf32>
    %89 = tpu.matmul %88, %77, %cst_39 {dimension_numbers = #tpu.dot_dimension_numbers<[2], [1], [1], [2], [0, 0, 0, 1, 1, 2], [0], [0]>} : vector<4x8x16xf32>, vector<4x16x16xf32>, vector<4x8x16xf32> -> vector<4x8x16xf32>
    "tpu.trace_stop"() : () -> ()
    %90 = vector.shape_cast %89 : vector<4x8x16xf32> to vector<32x16xf32>
    %c0_40 = arith.constant 0 : index
    %c48 = arith.constant 48 : index
    %91 = vector.load %arg12[%c0_40, %c48] : memref<32x64xf32, #tpu.memory_space<vmem>>, vector<32x16xf32>
    tpu.vector_store %arg12[%c0_40, %c48], %90 {strides = array<i32>} : memref<32x64xf32, #tpu.memory_space<vmem>>, vector<32x16xf32>,
    %c0_41 = arith.constant 0 : index
    %c0_42 = arith.constant 0 : index
    %92 = vector.load %arg12[%c0_41, %c0_42] : memref<32x64xf32, #tpu.memory_space<vmem>>, vector<32x64xf32>
    %c0_43 = arith.constant 0 : index
    %c0_44 = arith.constant 0 : index
    %93 = vector.load %arg9[%c0_43, %c0_44] : memref<64x256xf32, #tpu.memory_space<vmem>>, vector<64x256xf32>
    %cst_45 = arith.constant dense<0.000000e+00> : vector<32x256xf32>
    %94 = tpu.matmul %92, %93, %cst_45 {dimension_numbers = #tpu.dot_dimension_numbers<[1], [0], [0], [1], [0, 0, 1, 1], [], []>} : vector<32x64xf32>, vector<64x256xf32>, vector<32x256xf32> -> vector<32x256xf32>
    %c0_46 = arith.constant 0 : index
    %c0_47 = arith.constant 0 : index
    %95 = vector.load %arg10[%c0_46, %c0_47] : memref<1x256xf32, #tpu.memory_space<vmem>>, vector<1x256xf32>
    %96 = vector.broadcast %95 : vector<1x256xf32> to vector<32x256xf32>
    %97 = arith.addf %94, %96 : vector<32x256xf32>
    %98 = vector.shape_cast %97 : vector<32x256xf32> to vector<4x8x256xf32>
    %c0_48 = arith.constant 0 : index
    %c0_49 = arith.constant 0 : index
    %c0_50 = arith.constant 0 : index
    %99 = vector.load %arg11[%c0_48, %c0_49, %c0_50] : memref<4x8x256xf32, #tpu.memory_space<vmem>>, vector<4x8x256xf32>
    tpu.vector_store %arg11[%c0_48, %c0_49, %c0_50], %98 {strides = array<i32>} : memref<4x8x256xf32, #tpu.memory_space<vmem>>, vector<4x8x256xf32>,
    return
  }
  func.func @transform_0(%arg0: i32) -> (i32, i32, i32) {
    %c0_i32 = arith.constant 0 : i32
    %c0_i32_0 = arith.constant 0 : i32
    %c0_i32_1 = arith.constant 0 : i32
    return %arg0, %c0_i32, %c0_i32_0 : i32, i32, i32
  }
  func.func @transform_1(%arg0: i32) -> (i32, i32, i32) {
    %c0_i32 = arith.constant 0 : i32
    %c0_i32_0 = arith.constant 0 : i32
    %c0_i32_1 = arith.constant 0 : i32
    return %arg0, %c0_i32, %c0_i32_0 : i32, i32, i32
  }
  func.func @transform_2(%arg0: i32) -> (i32, i32) {
    %c0_i32 = arith.constant 0 : i32
    %c0_i32_0 = arith.constant 0 : i32
    %c0_i32_1 = arith.constant 0 : i32
    return %c0_i32, %c0_i32_0 : i32, i32
  }
  func.func @transform_3(%arg0: i32) -> (i32, i32) {
    %c0_i32 = arith.constant 0 : i32
    %c0_i32_0 = arith.constant 0 : i32
    %c0_i32_1 = arith.constant 0 : i32
    return %c0_i32, %c0_i32_0 : i32, i32
  }
  func.func @transform_4(%arg0: i32) -> (i32, i32) {
    %c0_i32 = arith.constant 0 : i32
    %c0_i32_0 = arith.constant 0 : i32
    %c0_i32_1 = arith.constant 0 : i32
    return %c0_i32, %c0_i32_0 : i32, i32
  }
  func.func @transform_5(%arg0: i32) -> (i32, i32) {
    %c0_i32 = arith.constant 0 : i32
    %c0_i32_0 = arith.constant 0 : i32
    %c0_i32_1 = arith.constant 0 : i32
    return %c0_i32, %c0_i32_0 : i32, i32
  }
  func.func @transform_6(%arg0: i32) -> (i32, i32) {
    %c0_i32 = arith.constant 0 : i32
    %c0_i32_0 = arith.constant 0 : i32
    %c0_i32_1 = arith.constant 0 : i32
    return %c0_i32, %c0_i32_0 : i32, i32
  }
  func.func @transform_7(%arg0: i32) -> (i32, i32) {
    %c0_i32 = arith.constant 0 : i32
    %c0_i32_0 = arith.constant 0 : i32
    %c0_i32_1 = arith.constant 0 : i32
    return %c0_i32, %c0_i32_0 : i32, i32
  }
  func.func @transform_8(%arg0: i32) -> (i32, i32) {
    %c0_i32 = arith.constant 0 : i32
    %c0_i32_0 = arith.constant 0 : i32
    %c0_i32_1 = arith.constant 0 : i32
    return %c0_i32, %c0_i32_0 : i32, i32
  }
  func.func @transform_9(%arg0: i32) -> (i32, i32) {
    %c0_i32 = arith.constant 0 : i32
    %c0_i32_0 = arith.constant 0 : i32
    %c0_i32_1 = arith.constant 0 : i32
    return %c0_i32, %c0_i32_0 : i32, i32
  }
  func.func @transform_10(%arg0: i32) -> (i32, i32, i32) {
    %c0_i32 = arith.constant 0 : i32
    %c0_i32_0 = arith.constant 0 : i32
    %c0_i32_1 = arith.constant 0 : i32
    return %arg0, %c0_i32, %c0_i32_0 : i32, i32, i32
  }
}

</mosaic_0001>

<llo_original>
// kernel: tpu_custom_call.1
$region0: #{tpu_custom_call.1}
  #allocation0 [shape = 'u32[]', space=smem, size = 0x4, offset = 0x4, fixed_abs, tag = 'smem constant byte address 0x4 - core index']
  #allocation1 [shape = 'u32[72,128]{1,0:T(1,128)}', space=vmem, size = 0x9000, scoped, tag = 'internal scratch']
  #allocation2 [shape = 'f32[32,64]{1,0:T(8,128)}', space=vmem, size = 0x4000, scoped, tag = 'scratch operand']
  %s0 = inlined_call_operand.vmem [shape: f32[8,8,256], index: 0, kind: input, shape index: {}]
  %s1 = inlined_call_operand.vmem [shape: f32[8,16,256], index: 1, kind: input, shape index: {}]
  %s2 = inlined_call_operand.vmem [shape: f32[256,64], index: 2, kind: input, shape index: {}]
  %s3 = inlined_call_operand.vmem [shape: f32[1,64], index: 3, kind: input, shape index: {}]
  %s4 = inlined_call_operand.vmem [shape: f32[256,64], index: 4, kind: input, shape index: {}]
  %s5 = inlined_call_operand.vmem [shape: f32[1,64], index: 5, kind: input, shape index: {}]
  %s6 = inlined_call_operand.vmem [shape: f32[256,64], index: 6, kind: input, shape index: {}]
  %s7 = inlined_call_operand.vmem [shape: f32[1,64], index: 7, kind: input, shape index: {}]
  %s8 = inlined_call_operand.vmem [shape: f32[64,256], index: 8, kind: input, shape index: {}]
  %s9 = inlined_call_operand.vmem [shape: f32[1,256], index: 9, kind: input, shape index: {}]
  %s10 = inlined_call_operand.hbm [shape: f32[8,8,256], index: 10, kind: output, shape index: {}]
  %s11 = sld [smem:[#allocation0]]
  $region73: #{tpu_custom_call.1} parent=0
    _
  %s13 = ssub.s32 1, %s11
  %s14 = scalar_select 0, %s13, %s11
  $region1: #{tpu_custom_call.1} parent=0
    #allocation3 [shape = 'u8[65536]{0}', space=vmem, size = 0x10000, scoped, tag = 'output window, operand 0']
    #allocation4 [shape = 's32[2]{0}', space=sflag, size = 0x8, scoped, tag = 'scoped memory for tpu_custom_call.1']
    %15 = vsyncpa [#allocation4], 0
    %s16 = scalar_lea.sflag [#allocation4], 1
    %17 = vsyncpa %s16, 0
    loop: start=0, step=1, limit=4
    $region2: #{tpu_custom_call.1} parent=1 // loop_pre_header
      _
    $region3: #{tpu_custom_call.1} parent=1 // loop_header
      %s19 = sphi 0, %s23
      %p20 = scmp.ge.s32.totalorder %s19, 4
      %s29 = sphi 0, %s31
      %s32 = sphi 0, %s29
      %s33 = sphi 0, %s32
      %s49 = sphi 0, %s33
      %s55 = sphi 0, %s57
      %s58 = sphi 0, %s55
      %s59 = sphi 0, %s58
      %s75 = sphi 0, %s59
      %s79 = sphi 0, %s79
      %s81 = sphi 0, %s79
      %s82 = sphi 0, %s81
      %s96 = sphi 0, %s82
      %s100 = sphi 0, %s100
      %s102 = sphi 0, %s100
      %s103 = sphi 0, %s102
      %s117 = sphi 0, %s103
      %s121 = sphi 0, %s121
      %s123 = sphi 0, %s121
      %s124 = sphi 0, %s123
      %s138 = sphi 0, %s124
      %s142 = sphi 0, %s142
      %s144 = sphi 0, %s142
      %s145 = sphi 0, %s144
      %s159 = sphi 0, %s145
      %s163 = sphi 0, %s163
      %s165 = sphi 0, %s163
      %s166 = sphi 0, %s165
      %s180 = sphi 0, %s166
      %s184 = sphi 0, %s184
      %s186 = sphi 0, %s184
      %s187 = sphi 0, %s186
      %s201 = sphi 0, %s187
      %s205 = sphi 0, %s205
      %s207 = sphi 0, %s205
      %s208 = sphi 0, %s207
      %s222 = sphi 0, %s208
      %s226 = sphi 0, %s226
      %s228 = sphi 0, %s226
      %s229 = sphi 0, %s228
      %s243 = sphi 0, %s229
      %s249 = sphi 0, %s251
      %s252 = sphi 0, %s249
      %s253 = sphi 0, %s252
      %s269 = sphi 0, %s253
    $region4: #{tpu_custom_call.1} parent=1 // loop_header_branch
      %22 = sbr.rel (%p20) target = $region8
    $region5: #{tpu_custom_call.1} parent=1 // loop_body
      %s24 = ssub.s32 %s19, 1
      %s25 = ssub.s32 %s19, 2
      %s26 = sadd.s32 %s19, 1
      %s27 = ssub.s32 %s19, %s26
      %p28 = scmp.eq.s32.totalorder %s27, 0
      %s30 = sadd.s32 %s29, 1
      %s31 = scalar_select %p28, %s29, %s30
      %p34 = pneg %p28
      %p35 = scmp.eq.s32.totalorder %s19, 1
      %p36 = por %p34, %p35
      %p37 = scmp.ne.s32.totalorder %s29, %s32
      %p38 = scmp.eq.s32.totalorder %s19, 0
      %p39 = por %p37, %p38
      %p40 = scmp.ne.s32.totalorder %s29, %s32
      %p41 = scmp.eq.s32.totalorder %s24, 1
      %p42 = por %p40, %p41
      %p43 = scmp.ne.s32.totalorder %s32, %s33
      %p44 = scmp.eq.s32.totalorder %s24, 0
      %p45 = por %p43, %p44
      %p46 = scmp.ne.s32.totalorder %s32, %s33
      %p47 = scmp.eq.s32.totalorder %s25, 1
      %p48 = por %p46, %p47
      %p50 = scmp.ne.s32.totalorder %s33, %s49
      %p51 = scmp.eq.s32.totalorder %s25, 0
      %p52 = por %p50, %p51
      %s53 = ssub.s32 %s19, %s26
      %p54 = scmp.eq.s32.totalorder %s53, 0
      %s56 = sadd.s32 %s55, 1
      %s57 = scalar_select %p54, %s55, %s56
      %p60 = pneg %p54
      %p61 = scmp.eq.s32.totalorder %s19, 1
      %p62 = por %p60, %p61
      %p63 = scmp.ne.s32.totalorder %s55, %s58
      %p64 = scmp.eq.s32.totalorder %s19, 0
      %p65 = por %p63, %p64
      %p66 = scmp.ne.s32.totalorder %s55, %s58
      %p67 = scmp.eq.s32.totalorder %s24, 1
      %p68 = por %p66, %p67
      %p69 = scmp.ne.s32.totalorder %s58, %s59
      %p70 = scmp.eq.s32.totalorder %s24, 0
      %p71 = por %p69, %p70
      %p72 = scmp.ne.s32.totalorder %s58, %s59
      %p73 = scmp.eq.s32.totalorder %s25, 1
      %p74 = por %p72, %p73
      %p76 = scmp.ne.s32.totalorder %s59, %s75
      %p77 = scmp.eq.s32.totalorder %s25, 0
      %p78 = por %p76, %p77
      %s80 = sadd.s32 %s79, 1
      %p83 = scmp.eq.s32.totalorder %s19, 1
      %p84 = scmp.ne.s32.totalorder %s79, %s81
      %p85 = scmp.eq.s32.totalorder %s19, 0
      %p86 = por %p84, %p85
      %p87 = scmp.ne.s32.totalorder %s79, %s81
      %p88 = scmp.eq.s32.totalorder %s24, 1
      %p89 = por %p87, %p88
      %p90 = scmp.ne.s32.totalorder %s81, %s82
      %p91 = scmp.eq.s32.totalorder %s24, 0
      %p92 = por %p90, %p91
      %p93 = scmp.ne.s32.totalorder %s81, %s82
      %p94 = scmp.eq.s32.totalorder %s25, 1
      %p95 = por %p93, %p94
      %p97 = scmp.ne.s32.totalorder %s82, %s96
      %p98 = scmp.eq.s32.totalorder %s25, 0
      %p99 = por %p97, %p98
      %s101 = sadd.s32 %s100, 1
      %p104 = scmp.eq.s32.totalorder %s19, 1
      %p105 = scmp.ne.s32.totalorder %s100, %s102
      %p106 = scmp.eq.s32.totalorder %s19, 0
      %p107 = por %p105, %p106
      %p108 = scmp.ne.s32.totalorder %s100, %s102
      %p109 = scmp.eq.s32.totalorder %s24, 1
      %p110 = por %p108, %p109
      %p111 = scmp.ne.s32.totalorder %s102, %s103
      %p112 = scmp.eq.s32.totalorder %s24, 0
      %p113 = por %p111, %p112
      %p114 = scmp.ne.s32.totalorder %s102, %s103
      %p115 = scmp.eq.s32.totalorder %s25, 1
      %p116 = por %p114, %p115
      %p118 = scmp.ne.s32.totalorder %s103, %s117
      %p119 = scmp.eq.s32.totalorder %s25, 0
      %p120 = por %p118, %p119
      %s122 = sadd.s32 %s121, 1
      %p125 = scmp.eq.s32.totalorder %s19, 1
      %p126 = scmp.ne.s32.totalorder %s121, %s123
      %p127 = scmp.eq.s32.totalorder %s19, 0
      %p128 = por %p126, %p127
      %p129 = scmp.ne.s32.totalorder %s121, %s123
      %p130 = scmp.eq.s32.totalorder %s24, 1
      %p131 = por %p129, %p130
      %p132 = scmp.ne.s32.totalorder %s123, %s124
      %p133 = scmp.eq.s32.totalorder %s24, 0
      %p134 = por %p132, %p133
      %p135 = scmp.ne.s32.totalorder %s123, %s124
      %p136 = scmp.eq.s32.totalorder %s25, 1
      %p137 = por %p135, %p136
      %p139 = scmp.ne.s32.totalorder %s124, %s138
      %p140 = scmp.eq.s32.totalorder %s25, 0
      %p141 = por %p139, %p140
      %s143 = sadd.s32 %s142, 1
      %p146 = scmp.eq.s32.totalorder %s19, 1
      %p147 = scmp.ne.s32.totalorder %s142, %s144
      %p148 = scmp.eq.s32.totalorder %s19, 0
      %p149 = por %p147, %p148
      %p150 = scmp.ne.s32.totalorder %s142, %s144
      %p151 = scmp.eq.s32.totalorder %s24, 1
      %p152 = por %p150, %p151
      %p153 = scmp.ne.s32.totalorder %s144, %s145
      %p154 = scmp.eq.s32.totalorder %s24, 0
      %p155 = por %p153, %p154
      %p156 = scmp.ne.s32.totalorder %s144, %s145
      %p157 = scmp.eq.s32.totalorder %s25, 1
      %p158 = por %p156, %p157
      %p160 = scmp.ne.s32.totalorder %s145, %s159
      %p161 = scmp.eq.s32.totalorder %s25, 0
      %p162 = por %p160, %p161
      %s164 = sadd.s32 %s163, 1
      %p167 = scmp.eq.s32.totalorder %s19, 1
      %p168 = scmp.ne.s32.totalorder %s163, %s165
      %p169 = scmp.eq.s32.totalorder %s19, 0
      %p170 = por %p168, %p169
      %p171 = scmp.ne.s32.totalorder %s163, %s165
      %p172 = scmp.eq.s32.totalorder %s24, 1
      %p173 = por %p171, %p172
      %p174 = scmp.ne.s32.totalorder %s165, %s166
      %p175 = scmp.eq.s32.totalorder %s24, 0
      %p176 = por %p174, %p175
      %p177 = scmp.ne.s32.totalorder %s165, %s166
      %p178 = scmp.eq.s32.totalorder %s25, 1
      %p179 = por %p177, %p178
      %p181 = scmp.ne.s32.totalorder %s166, %s180
      %p182 = scmp.eq.s32.totalorder %s25, 0
      %p183 = por %p181, %p182
      %s185 = sadd.s32 %s184, 1
      %p188 = scmp.eq.s32.totalorder %s19, 1
      %p189 = scmp.ne.s32.totalorder %s184, %s186
      %p190 = scmp.eq.s32.totalorder %s19, 0
      %p191 = por %p189, %p190
      %p192 = scmp.ne.s32.totalorder %s184, %s186
      %p193 = scmp.eq.s32.totalorder %s24, 1
      %p194 = por %p192, %p193
      %p195 = scmp.ne.s32.totalorder %s186, %s187
      %p196 = scmp.eq.s32.totalorder %s24, 0
      %p197 = por %p195, %p196
      %p198 = scmp.ne.s32.totalorder %s186, %s187
      %p199 = scmp.eq.s32.totalorder %s25, 1
      %p200 = por %p198, %p199
      %p202 = scmp.ne.s32.totalorder %s187, %s201
      %p203 = scmp.eq.s32.totalorder %s25, 0
      %p204 = por %p202, %p203
      %s206 = sadd.s32 %s205, 1
      %p209 = scmp.eq.s32.totalorder %s19, 1
      %p210 = scmp.ne.s32.totalorder %s205, %s207
      %p211 = scmp.eq.s32.totalorder %s19, 0
      %p212 = por %p210, %p211
      %p213 = scmp.ne.s32.totalorder %s205, %s207
      %p214 = scmp.eq.s32.totalorder %s24, 1
      %p215 = por %p213, %p214
      %p216 = scmp.ne.s32.totalorder %s207, %s208
      %p217 = scmp.eq.s32.totalorder %s24, 0
      %p218 = por %p216, %p217
      %p219 = scmp.ne.s32.totalorder %s207, %s208
      %p220 = scmp.eq.s32.totalorder %s25, 1
      %p221 = por %p219, %p220
      %p223 = scmp.ne.s32.totalorder %s208, %s222
      %p224 = scmp.eq.s32.totalorder %s25, 0
      %p225 = por %p223, %p224
      %s227 = sadd.s32 %s226, 1
      %p230 = scmp.eq.s32.totalorder %s19, 1
      %p231 = scmp.ne.s32.totalorder %s226, %s228
      %p232 = scmp.eq.s32.totalorder %s19, 0
      %p233 = por %p231, %p232
      %p234 = scmp.ne.s32.totalorder %s226, %s228
      %p235 = scmp.eq.s32.totalorder %s24, 1
      %p236 = por %p234, %p235
      %p237 = scmp.ne.s32.totalorder %s228, %s229
      %p238 = scmp.eq.s32.totalorder %s24, 0
      %p239 = por %p237, %p238
      %p240 = scmp.ne.s32.totalorder %s228, %s229
      %p241 = scmp.eq.s32.totalorder %s25, 1
      %p242 = por %p240, %p241
      %p244 = scmp.ne.s32.totalorder %s229, %s243
      %p245 = scmp.eq.s32.totalorder %s25, 0
      %p246 = por %p244, %p245
      %s247 = ssub.s32 %s19, %s26
      %p248 = scmp.eq.s32.totalorder %s247, 0
      %s250 = sadd.s32 %s249, 1
      %s251 = scalar_select %p248, %s249, %s250
      %p254 = pneg %p248
      %p255 = scmp.eq.s32.totalorder %s19, 1
      %p256 = por %p254, %p255
      %p257 = scmp.ne.s32.totalorder %s249, %s252
      %p258 = scmp.eq.s32.totalorder %s19, 0
      %p259 = por %p257, %p258
      %p260 = scmp.ne.s32.totalorder %s249, %s252
      %p261 = scmp.eq.s32.totalorder %s24, 1
      %p262 = por %p260, %p261
      %p263 = scmp.ne.s32.totalorder %s252, %s253
      %p264 = scmp.eq.s32.totalorder %s24, 0
      %p265 = por %p263, %p264
      %p266 = scmp.ne.s32.totalorder %s252, %s253
      %p267 = scmp.eq.s32.totalorder %s25, 1
      %p268 = por %p266, %p267
      %p270 = scmp.ne.s32.totalorder %s253, %s269
      %p271 = scmp.eq.s32.totalorder %s25, 0
      %p272 = por %p270, %p271
      %p273 = scmp.le.s32.totalorder 1, %s19
      %p274 = scmp.lt.s32.totalorder %s19, 3
      %p275 = pnand %p273, %p274
      %p276 = pneg %p275
      // Predicated region
      $region9: #{tpu_custom_call.1} parent=5 // pred_check
        _
      $region10: #{tpu_custom_call.1} parent=5 // pred_check_branch
        %278 = sbr.rel (%p275) target = $region12
      $region11: #{tpu_custom_call.1} parent=5 // pred_region
        %s279 = ssub.s32 %s19, 1
        // Predicated region
        $region13: #{tpu_custom_call.1} parent=11 // pred_check
          %p280 = pneg %p92
        $region14: #{tpu_custom_call.1} parent=11 // pred_check_branch
          %282 = sbr.rel (%p280) target = $region16
        $region15: #{tpu_custom_call.1} parent=11 // pred_region
          _
        $region16: #{tpu_custom_call.1} parent=11 // pred_fallthru
          _
        // Predicated region
        $region17: #{tpu_custom_call.1} parent=11 // pred_check
          %p283 = pneg %p113
        $region18: #{tpu_custom_call.1} parent=11 // pred_check_branch
          %285 = sbr.rel (%p283) target = $region20
        $region19: #{tpu_custom_call.1} parent=11 // pred_region
          _
        $region20: #{tpu_custom_call.1} parent=11 // pred_fallthru
          _
        // Predicated region
        $region21: #{tpu_custom_call.1} parent=11 // pred_check
          %p286 = pneg %p134
        $region22: #{tpu_custom_call.1} parent=11 // pred_check_branch
          %288 = sbr.rel (%p286) target = $region24
        $region23: #{tpu_custom_call.1} parent=11 // pred_region
          _
        $region24: #{tpu_custom_call.1} parent=11 // pred_fallthru
          _
        // Predicated region
        $region25: #{tpu_custom_call.1} parent=11 // pred_check
          %p289 = pneg %p155
        $region26: #{tpu_custom_call.1} parent=11 // pred_check_branch
          %291 = sbr.rel (%p289) target = $region28
        $region27: #{tpu_custom_call.1} parent=11 // pred_region
          _
        $region28: #{tpu_custom_call.1} parent=11 // pred_fallthru
          _
        // Predicated region
        $region29: #{tpu_custom_call.1} parent=11 // pred_check
          %p292 = pneg %p176
        $region30: #{tpu_custom_call.1} parent=11 // pred_check_branch
          %294 = sbr.rel (%p292) target = $region32
        $region31: #{tpu_custom_call.1} parent=11 // pred_region
          _
        $region32: #{tpu_custom_call.1} parent=11 // pred_fallthru
          _
        // Predicated region
        $region33: #{tpu_custom_call.1} parent=11 // pred_check
          %p295 = pneg %p197
        $region34: #{tpu_custom_call.1} parent=11 // pred_check_branch
          %297 = sbr.rel (%p295) target = $region36
        $region35: #{tpu_custom_call.1} parent=11 // pred_region
          _
        $region36: #{tpu_custom_call.1} parent=11 // pred_fallthru
          _
        // Predicated region
        $region37: #{tpu_custom_call.1} parent=11 // pred_check
          %p298 = pneg %p218
        $region38: #{tpu_custom_call.1} parent=11 // pred_check_branch
          %300 = sbr.rel (%p298) target = $region40
        $region39: #{tpu_custom_call.1} parent=11 // pred_region
          _
        $region40: #{tpu_custom_call.1} parent=11 // pred_fallthru
          _
        // Predicated region
        $region41: #{tpu_custom_call.1} parent=11 // pred_check
          %p301 = pneg %p239
        $region42: #{tpu_custom_call.1} parent=11 // pred_check_branch
          %303 = sbr.rel (%p301) target = $region44
        $region43: #{tpu_custom_call.1} parent=11 // pred_region
          _
        $region44: #{tpu_custom_call.1} parent=11 // pred_fallthru
          _
      $region12: #{tpu_custom_call.1} parent=5 // pred_fallthru
        _
      %p304 = scmp.lt.s32.totalorder %s19, 2
      // Predicated region
      $region45: #{tpu_custom_call.1} parent=5 // pred_check
        %p305 = pneg %p304
      $region46: #{tpu_custom_call.1} parent=5 // pred_check_branch
        %307 = sbr.rel (%p305) target = $region48
      $region47: #{tpu_custom_call.1} parent=5 // pred_region
        // Predicated region
        $region49: #{tpu_custom_call.1} parent=47 // pred_check
          %p308 = pneg %p39
        $region50: #{tpu_custom_call.1} parent=47 // pred_check_branch
          %310 = sbr.rel (%p308) target = $region52
        $region51: #{tpu_custom_call.1} parent=47 // pred_region
          %s311 = smul.u32 4, %s19
          %p312 = scmp.lt.s32.totalorder %s311, 7
          %s313 = scalar_select %p312, %s311, 7
          %s314 = smul.addr %s313, 2
          %s315 = smul.addr %s314, 8
          %s316 = scalar_lea.vmem %s0, %s315
          %s317 = smul.u32 4, %s19
        $region52: #{tpu_custom_call.1} parent=47 // pred_fallthru
          _
        // Predicated region
        $region53: #{tpu_custom_call.1} parent=47 // pred_check
          %p318 = pneg %p65
        $region54: #{tpu_custom_call.1} parent=47 // pred_check_branch
          %320 = sbr.rel (%p318) target = $region56
        $region55: #{tpu_custom_call.1} parent=47 // pred_region
          %s321 = smul.u32 4, %s19
          %p322 = scmp.lt.s32.totalorder %s321, 7
          %s323 = scalar_select %p322, %s321, 7
          %s324 = smul.addr %s323, 4
          %s325 = smul.addr %s324, 8
          %s326 = scalar_lea.vmem %s1, %s325
          %s327 = smul.u32 4, %s19
        $region56: #{tpu_custom_call.1} parent=47 // pred_fallthru
          _
      $region48: #{tpu_custom_call.1} parent=5 // pred_fallthru
        _
      %p328 = scmp.le.s32.totalorder 1, %s19
      %p329 = scmp.lt.s32.totalorder %s19, 3
      %p330 = pnand %p328, %p329
      %p331 = pneg %p330
      // Predicated region
      $region57: #{tpu_custom_call.1} parent=5 // pred_check
        _
      $region58: #{tpu_custom_call.1} parent=5 // pred_check_branch
        %333 = sbr.rel (%p330) target = $region60
      $region59: #{tpu_custom_call.1} parent=5 // pred_region
        %s334 = ssub.s32 %s19, 1
        %s335 = smul.u32 4, %s24
        %p336 = scmp.lt.s32.totalorder %s335, 7
        %s337 = scalar_select %p336, %s335, 7
        %s338 = smul.addr %s337, 2
        %s339 = smul.addr %s338, 8
        %s340 = scalar_lea.vmem %s0, %s339
        %p341 = pneg %p45
        %p342 = pneg %p42
        %s343 = smul.u32 4, %s24
        %p344 = scmp.lt.s32.totalorder %s343, 7
        %s345 = scalar_select %p344, %s343, 7
        %s346 = smul.addr %s345, 4
        %s347 = smul.addr %s346, 8
        %s348 = scalar_lea.vmem %s1, %s347
        %p349 = pneg %p71
        %p350 = pneg %p68
        %p351 = pneg %p92
        %p352 = pneg %p89
        %p353 = pneg %p113
        %p354 = pneg %p110
        %p355 = pneg %p134
        %p356 = pneg %p131
        %p357 = pneg %p155
        %p358 = pneg %p152
        %p359 = pneg %p176
        %p360 = pneg %p173
        %p361 = pneg %p197
        %p362 = pneg %p194
        %p363 = pneg %p218
        %p364 = pneg %p215
        %p365 = pneg %p239
        %p366 = pneg %p236
        %p367 = pneg %p265
        %p368 = pneg %p262
        %s369 = sand.u32 %s252, 1
        %s370 = scalar_lea.sflag [#allocation4], %s369
        %s371 = sand.u32 %s252, 1
        %s372 = smul.addr %s371, 64
        %s373 = scalar_lea.vmem [#allocation3], %s372
        %s374 = smul.u32 4, %s24
        %p375 = scmp.lt.s32.totalorder %s374, 7
        %s376 = scalar_select %p375, %s374, 7
        %s377 = smul.addr %s376, 2
        %s378 = smul.addr %s377, 8
        %s379 = scalar_lea.vmem %s0, %s378
        %s380 = smul.u32 4, %s24
        %s381 = smul.u32 4, %s24
        %p382 = scmp.lt.s32.totalorder %s381, 7
        %s383 = scalar_select %p382, %s381, 7
        %s384 = smul.addr %s383, 4
        %s385 = smul.addr %s384, 8
        %s386 = scalar_lea.vmem %s1, %s385
        %s387 = smul.u32 4, %s24
        %s388 = smul.u32 4, %s24
        %v389 = vld [vmem:[%s379] sm:$0xff]
        %v390 = vld [vmem:[%s379 + $0x8] sm:$0xff]
        %v391 = vld [vmem:[%s379 + $0x10] sm:$0xff]
        %v392 = vld [vmem:[%s379 + $0x18] sm:$0xff]
        %v393 = vld [vmem:[%s379 + $0x20] sm:$0xff]
        %v394 = vld [vmem:[%s379 + $0x28] sm:$0xff]
        %v395 = vld [vmem:[%s379 + $0x30] sm:$0xff]
        %v396 = vld [vmem:[%s379 + $0x38] sm:$0xff]
        %v397 = vld [vmem:[%s386] sm:$0xff]
        %v398 = vld [vmem:[%s386 + $0x8] sm:$0xff]
        %v399 = vld [vmem:[%s386 + $0x10] sm:$0xff]
        %v400 = vld [vmem:[%s386 + $0x18] sm:$0xff]
        %v401 = vld [vmem:[%s386 + $0x20] sm:$0xff]
        %v402 = vld [vmem:[%s386 + $0x28] sm:$0xff]
        %v403 = vld [vmem:[%s386 + $0x30] sm:$0xff]
        %v404 = vld [vmem:[%s386 + $0x38] sm:$0xff]
        %v405 = vld [vmem:[%s386 + $0x40] sm:$0xff]
        %v406 = vld [vmem:[%s386 + $0x48] sm:$0xff]
        %v407 = vld [vmem:[%s386 + $0x50] sm:$0xff]
        %v408 = vld [vmem:[%s386 + $0x58] sm:$0xff]
        %v409 = vld [vmem:[%s386 + $0x60] sm:$0xff]
        %v410 = vld [vmem:[%s386 + $0x68] sm:$0xff]
        %v411 = vld [vmem:[%s386 + $0x70] sm:$0xff]
        %v412 = vld [vmem:[%s386 + $0x78] sm:$0xff]
        %v413 = vld [vmem:[%s2] sm:$0xff]
        %v414 = vld [vmem:[%s2 + $0x8] sm:$0xff]
        %v415 = vld [vmem:[%s2 + $0x10] sm:$0xff]
        %v416 = vld [vmem:[%s2 + $0x18] sm:$0xff]
        %v417 = vld [vmem:[%s2 + $0x20] sm:$0xff]
        %v418 = vld [vmem:[%s2 + $0x28] sm:$0xff]
        %v419 = vld [vmem:[%s2 + $0x30] sm:$0xff]
        %v420 = vld [vmem:[%s2 + $0x38] sm:$0xff]
        %v421 = vld [vmem:[%s2 + $0x40] sm:$0xff]
        %v422 = vld [vmem:[%s2 + $0x48] sm:$0xff]
        %v423 = vld [vmem:[%s2 + $0x50] sm:$0xff]
        %v424 = vld [vmem:[%s2 + $0x58] sm:$0xff]
        %v425 = vld [vmem:[%s2 + $0x60] sm:$0xff]
        %v426 = vld [vmem:[%s2 + $0x68] sm:$0xff]
        %v427 = vld [vmem:[%s2 + $0x70] sm:$0xff]
        %v428 = vld [vmem:[%s2 + $0x78] sm:$0xff]
        %v429 = vld [vmem:[%s2 + $0x80] sm:$0xff]
        %v430 = vld [vmem:[%s2 + $0x88] sm:$0xff]
        %v431 = vld [vmem:[%s2 + $0x90] sm:$0xff]
        %v432 = vld [vmem:[%s2 + $0x98] sm:$0xff]
        %v433 = vld [vmem:[%s2 + $0xa0] sm:$0xff]
        %v434 = vld [vmem:[%s2 + $0xa8] sm:$0xff]
        %v435 = vld [vmem:[%s2 + $0xb0] sm:$0xff]
        %v436 = vld [vmem:[%s2 + $0xb8] sm:$0xff]
        %v437 = vld [vmem:[%s2 + $0xc0] sm:$0xff]
        %v438 = vld [vmem:[%s2 + $0xc8] sm:$0xff]
        %v439 = vld [vmem:[%s2 + $0xd0] sm:$0xff]
        %v440 = vld [vmem:[%s2 + $0xd8] sm:$0xff]
        %v441 = vld [vmem:[%s2 + $0xe0] sm:$0xff]
        %v442 = vld [vmem:[%s2 + $0xe8] sm:$0xff]
        %v443 = vld [vmem:[%s2 + $0xf0] sm:$0xff]
        %v444 = vld [vmem:[%s2 + $0xf8] sm:$0xff]
        %v445 = vld [vmem:[%s3] sm:$0x1]
        %v447 = vperm.slane %v445, 0
        %449 = vmatpush.msra.mxu0 %v428
        %450 = vmatpush.msra.mxu0 %v427
        %451 = vmatpush.msra.mxu0 %v426
        %452 = vmatpush.msra.mxu0 %v425
        %453 = vmatpush.msra.mxu0 %v424
        %454 = vmatpush.msra.mxu0 %v423
        %455 = vmatpush.msra.mxu0 %v422
        %456 = vmatpush.msra.mxu0 %v421
        %457 = vmatpush.msra.mxu0 %v420
        %458 = vmatpush.msra.mxu0 %v419
        %459 = vmatpush.msra.mxu0 %v418
        %460 = vmatpush.msra.mxu0 %v417
        %461 = vmatpush.msra.mxu0 %v416
        %462 = vmatpush.msra.mxu0 %v415
        %463 = vmatpush.msra.mxu0 %v414
        %464 = vmatpush.msra.mxu0 %v413
        %465 = vmatmul.f32.gmra.mxu0 %v389
        %v466 = vpop.f32.mrf.mxu0
        %v467 = vadd.f32 %v447, %v466
        %468 = vmatmul.f32.gmra.mxu0 %v391
        %v469 = vpop.f32.mrf.mxu0
        %v470 = vadd.f32 %v447, %v469
        %471 = vmatmul.f32.gmra.mxu0 %v393
        %v472 = vpop.f32.mrf.mxu0
        %v473 = vadd.f32 %v447, %v472
        %474 = vmatmul.f32.gmra.mxu0 %v395
        %v475 = vpop.f32.mrf.mxu0
        %v476 = vadd.f32 %v447, %v475
        %477 = vdwg.mxu0
        %478 = vmatpush.msra.mxu0 %v444
        %479 = vmatpush.msra.mxu0 %v443
        %480 = vmatpush.msra.mxu0 %v442
        %481 = vmatpush.msra.mxu0 %v441
        %482 = vmatpush.msra.mxu0 %v440
        %483 = vmatpush.msra.mxu0 %v439
        %484 = vmatpush.msra.mxu0 %v438
        %485 = vmatpush.msra.mxu0 %v437
        %486 = vmatpush.msra.mxu0 %v436
        %487 = vmatpush.msra.mxu0 %v435
        %488 = vmatpush.msra.mxu0 %v434
        %489 = vmatpush.msra.mxu0 %v433
        %490 = vmatpush.msra.mxu0 %v432
        %491 = vmatpush.msra.mxu0 %v431
        %492 = vmatpush.msra.mxu0 %v430
        %493 = vmatpush.msra.mxu0 %v429
        %494 = vmatmul.f32.gmra.mxu0 %v390
        %v495 = vpop.f32.mrf.mxu0
        %v496 = vadd.f32 %v467, %v495
        %497 = vmatmul.f32.gmra.mxu0 %v392
        %v498 = vpop.f32.mrf.mxu0
        %v499 = vadd.f32 %v470, %v498
        %500 = vmatmul.f32.gmra.mxu0 %v394
        %v501 = vpop.f32.mrf.mxu0
        %v502 = vadd.f32 %v473, %v501
        %503 = vmatmul.f32.gmra.mxu0 %v396
        %v504 = vpop.f32.mrf.mxu0
        %v505 = vadd.f32 %v476, %v504
        %506 = vdwg.mxu0
        %v507 = vld [vmem:[%s4] sm:$0xff]
        %v508 = vld [vmem:[%s4 + $0x8] sm:$0xff]
        %v509 = vld [vmem:[%s4 + $0x10] sm:$0xff]
        %v510 = vld [vmem:[%s4 + $0x18] sm:$0xff]
        %v511 = vld [vmem:[%s4 + $0x20] sm:$0xff]
        %v512 = vld [vmem:[%s4 + $0x28] sm:$0xff]
        %v513 = vld [vmem:[%s4 + $0x30] sm:$0xff]
        %v514 = vld [vmem:[%s4 + $0x38] sm:$0xff]
        %v515 = vld [vmem:[%s4 + $0x40] sm:$0xff]
        %v516 = vld [vmem:[%s4 + $0x48] sm:$0xff]
        %v517 = vld [vmem:[%s4 + $0x50] sm:$0xff]
        %v518 = vld [vmem:[%s4 + $0x58] sm:$0xff]
        %v519 = vld [vmem:[%s4 + $0x60] sm:$0xff]
        %v520 = vld [vmem:[%s4 + $0x68] sm:$0xff]
        %v521 = vld [vmem:[%s4 + $0x70] sm:$0xff]
        %v522 = vld [vmem:[%s4 + $0x78] sm:$0xff]
        %v523 = vld [vmem:[%s4 + $0x80] sm:$0xff]
        %v524 = vld [vmem:[%s4 + $0x88] sm:$0xff]
        %v525 = vld [vmem:[%s4 + $0x90] sm:$0xff]
        %v526 = vld [vmem:[%s4 + $0x98] sm:$0xff]
        %v527 = vld [vmem:[%s4 + $0xa0] sm:$0xff]
        %v528 = vld [vmem:[%s4 + $0xa8] sm:$0xff]
        %v529 = vld [vmem:[%s4 + $0xb0] sm:$0xff]
        %v530 = vld [vmem:[%s4 + $0xb8] sm:$0xff]
        %v531 = vld [vmem:[%s4 + $0xc0] sm:$0xff]
        %v532 = vld [vmem:[%s4 + $0xc8] sm:$0xff]
        %v533 = vld [vmem:[%s4 + $0xd0] sm:$0xff]
        %v534 = vld [vmem:[%s4 + $0xd8] sm:$0xff]
        %v535 = vld [vmem:[%s4 + $0xe0] sm:$0xff]
        %v536 = vld [vmem:[%s4 + $0xe8] sm:$0xff]
        %v537 = vld [vmem:[%s4 + $0xf0] sm:$0xff]
        %v538 = vld [vmem:[%s4 + $0xf8] sm:$0xff]
        %v539 = vld [vmem:[%s5] sm:$0x1]
        %v541 = vperm.slane %v539, 0
        %543 = vmatpush.msra.mxu0 %v522
        %544 = vmatpush.msra.mxu0 %v521
        %545 = vmatpush.msra.mxu0 %v520
        %546 = vmatpush.msra.mxu0 %v519
        %547 = vmatpush.msra.mxu0 %v518
        %548 = vmatpush.msra.mxu0 %v517
        %549 = vmatpush.msra.mxu0 %v516
        %550 = vmatpush.msra.mxu0 %v515
        %551 = vmatpush.msra.mxu0 %v514
        %552 = vmatpush.msra.mxu0 %v513
        %553 = vmatpush.msra.mxu0 %v512
        %554 = vmatpush.msra.mxu0 %v511
        %555 = vmatpush.msra.mxu0 %v510
        %556 = vmatpush.msra.mxu0 %v509
        %557 = vmatpush.msra.mxu0 %v508
        %558 = vmatpush.msra.mxu0 %v507
        %559 = vmatmul.f32.gmra.mxu0 %v397
        %v560 = vpop.f32.mrf.mxu0
        %v561 = vadd.f32 %v541, %v560
        %562 = vmatmul.f32.gmra.mxu0 %v399
        %v563 = vpop.f32.mrf.mxu0
        %v564 = vadd.f32 %v541, %v563
        %565 = vmatmul.f32.gmra.mxu0 %v401
        %v566 = vpop.f32.mrf.mxu0
        %v567 = vadd.f32 %v541, %v566
        %568 = vmatmul.f32.gmra.mxu0 %v403
        %v569 = vpop.f32.mrf.mxu0
        %v570 = vadd.f32 %v541, %v569
        %571 = vmatmul.f32.gmra.mxu0 %v405
        %v572 = vpop.f32.mrf.mxu0
        %v573 = vadd.f32 %v541, %v572
        %574 = vmatmul.f32.gmra.mxu0 %v407
        %v575 = vpop.f32.mrf.mxu0
        %v576 = vadd.f32 %v541, %v575
        %577 = vmatmul.f32.gmra.mxu0 %v409
        %v578 = vpop.f32.mrf.mxu0
        %v579 = vadd.f32 %v541, %v578
        %580 = vmatmul.f32.gmra.mxu0 %v411
        %v581 = vpop.f32.mrf.mxu0
        %v582 = vadd.f32 %v541, %v581
        %583 = vdwg.mxu0
        %584 = vmatpush.msra.mxu0 %v538
        %585 = vmatpush.msra.mxu0 %v537
        %586 = vmatpush.msra.mxu0 %v536
        %587 = vmatpush.msra.mxu0 %v535
        %588 = vmatpush.msra.mxu0 %v534
        %589 = vmatpush.msra.mxu0 %v533
        %590 = vmatpush.msra.mxu0 %v532
        %591 = vmatpush.msra.mxu0 %v531
        %592 = vmatpush.msra.mxu0 %v530
        %593 = vmatpush.msra.mxu0 %v529
        %594 = vmatpush.msra.mxu0 %v528
        %595 = vmatpush.msra.mxu0 %v527
        %596 = vmatpush.msra.mxu0 %v526
        %597 = vmatpush.msra.mxu0 %v525
        %598 = vmatpush.msra.mxu0 %v524
        %599 = vmatpush.msra.mxu0 %v523
        %600 = vmatmul.f32.gmra.mxu0 %v398
        %v601 = vpop.f32.mrf.mxu0
        %v602 = vadd.f32 %v561, %v601
        %603 = vmatmul.f32.gmra.mxu0 %v400
        %v604 = vpop.f32.mrf.mxu0
        %v605 = vadd.f32 %v564, %v604
        %606 = vmatmul.f32.gmra.mxu0 %v402
        %v607 = vpop.f32.mrf.mxu0
        %v608 = vadd.f32 %v567, %v607
        %609 = vmatmul.f32.gmra.mxu0 %v404
        %v610 = vpop.f32.mrf.mxu0
        %v611 = vadd.f32 %v570, %v610
        %612 = vmatmul.f32.gmra.mxu0 %v406
        %v613 = vpop.f32.mrf.mxu0
        %v614 = vadd.f32 %v573, %v613
        %615 = vmatmul.f32.gmra.mxu0 %v408
        %v616 = vpop.f32.mrf.mxu0
        %v617 = vadd.f32 %v576, %v616
        %618 = vmatmul.f32.gmra.mxu0 %v410
        %v619 = vpop.f32.mrf.mxu0
        %v620 = vadd.f32 %v579, %v619
        %621 = vmatmul.f32.gmra.mxu0 %v412
        %v622 = vpop.f32.mrf.mxu0
        %v623 = vadd.f32 %v582, %v622
        %624 = vdwg.mxu0
        %v625 = vld [vmem:[%s6] sm:$0xff]
        %v626 = vld [vmem:[%s6 + $0x8] sm:$0xff]
        %v627 = vld [vmem:[%s6 + $0x10] sm:$0xff]
        %v628 = vld [vmem:[%s6 + $0x18] sm:$0xff]
        %v629 = vld [vmem:[%s6 + $0x20] sm:$0xff]
        %v630 = vld [vmem:[%s6 + $0x28] sm:$0xff]
        %v631 = vld [vmem:[%s6 + $0x30] sm:$0xff]
        %v632 = vld [vmem:[%s6 + $0x38] sm:$0xff]
        %v633 = vld [vmem:[%s6 + $0x40] sm:$0xff]
        %v634 = vld [vmem:[%s6 + $0x48] sm:$0xff]
        %v635 = vld [vmem:[%s6 + $0x50] sm:$0xff]
        %v636 = vld [vmem:[%s6 + $0x58] sm:$0xff]
        %v637 = vld [vmem:[%s6 + $0x60] sm:$0xff]
        %v638 = vld [vmem:[%s6 + $0x68] sm:$0xff]
        %v639 = vld [vmem:[%s6 + $0x70] sm:$0xff]
        %v640 = vld [vmem:[%s6 + $0x78] sm:$0xff]
        %v641 = vld [vmem:[%s6 + $0x80] sm:$0xff]
        %v642 = vld [vmem:[%s6 + $0x88] sm:$0xff]
        %v643 = vld [vmem:[%s6 + $0x90] sm:$0xff]
        %v644 = vld [vmem:[%s6 + $0x98] sm:$0xff]
        %v645 = vld [vmem:[%s6 + $0xa0] sm:$0xff]
        %v646 = vld [vmem:[%s6 + $0xa8] sm:$0xff]
        %v647 = vld [vmem:[%s6 + $0xb0] sm:$0xff]
        %v648 = vld [vmem:[%s6 + $0xb8] sm:$0xff]
        %v649 = vld [vmem:[%s6 + $0xc0] sm:$0xff]
        %v650 = vld [vmem:[%s6 + $0xc8] sm:$0xff]
        %v651 = vld [vmem:[%s6 + $0xd0] sm:$0xff]
        %v652 = vld [vmem:[%s6 + $0xd8] sm:$0xff]
        %v653 = vld [vmem:[%s6 + $0xe0] sm:$0xff]
        %v654 = vld [vmem:[%s6 + $0xe8] sm:$0xff]
        %v655 = vld [vmem:[%s6 + $0xf0] sm:$0xff]
        %v656 = vld [vmem:[%s6 + $0xf8] sm:$0xff]
        %v657 = vld [vmem:[%s7] sm:$0x1]
        %v659 = vperm.slane %v657, 0
        %661 = vmatpush.msra.mxu0 %v640
        %662 = vmatpush.msra.mxu0 %v639
        %663 = vmatpush.msra.mxu0 %v638
        %664 = vmatpush.msra.mxu0 %v637
        %665 = vmatpush.msra.mxu0 %v636
        %666 = vmatpush.msra.mxu0 %v635
        %667 = vmatpush.msra.mxu0 %v634
        %668 = vmatpush.msra.mxu0 %v633
        %669 = vmatpush.msra.mxu0 %v632
        %670 = vmatpush.msra.mxu0 %v631
        %671 = vmatpush.msra.mxu0 %v630
        %672 = vmatpush.msra.mxu0 %v629
        %673 = vmatpush.msra.mxu0 %v628
        %674 = vmatpush.msra.mxu0 %v627
        %675 = vmatpush.msra.mxu0 %v626
        %676 = vmatpush.msra.mxu0 %v625
        %677 = vmatmul.f32.gmra.mxu0 %v397
        %v678 = vpop.f32.mrf.mxu0
        %v679 = vadd.f32 %v659, %v678
        %680 = vmatmul.f32.gmra.mxu0 %v399
        %v681 = vpop.f32.mrf.mxu0
        %v682 = vadd.f32 %v659, %v681
        %683 = vmatmul.f32.gmra.mxu0 %v401
        %v684 = vpop.f32.mrf.mxu0
        %v685 = vadd.f32 %v659, %v684
        %686 = vmatmul.f32.gmra.mxu0 %v403
        %v687 = vpop.f32.mrf.mxu0
        %v688 = vadd.f32 %v659, %v687
        %689 = vmatmul.f32.gmra.mxu0 %v405
        %v690 = vpop.f32.mrf.mxu0
        %v691 = vadd.f32 %v659, %v690
        %692 = vmatmul.f32.gmra.mxu0 %v407
        %v693 = vpop.f32.mrf.mxu0
        %v694 = vadd.f32 %v659, %v693
        %695 = vmatmul.f32.gmra.mxu0 %v409
        %v696 = vpop.f32.mrf.mxu0
        %v697 = vadd.f32 %v659, %v696
        %698 = vmatmul.f32.gmra.mxu0 %v411
        %v699 = vpop.f32.mrf.mxu0
        %v700 = vadd.f32 %v659, %v699
        %701 = vdwg.mxu0
        %702 = vmatpush.msra.mxu0 %v656
        %703 = vmatpush.msra.mxu0 %v655
        %704 = vmatpush.msra.mxu0 %v654
        %705 = vmatpush.msra.mxu0 %v653
        %706 = vmatpush.msra.mxu0 %v652
        %707 = vmatpush.msra.mxu0 %v651
        %708 = vmatpush.msra.mxu0 %v650
        %709 = vmatpush.msra.mxu0 %v649
        %710 = vmatpush.msra.mxu0 %v648
        %711 = vmatpush.msra.mxu0 %v647
        %712 = vmatpush.msra.mxu0 %v646
        %713 = vmatpush.msra.mxu0 %v645
        %714 = vmatpush.msra.mxu0 %v644
        %715 = vmatpush.msra.mxu0 %v643
        %716 = vmatpush.msra.mxu0 %v642
        %717 = vmatpush.msra.mxu0 %v641
        %718 = vmatmul.f32.gmra.mxu0 %v398
        %v719 = vpop.f32.mrf.mxu0
        %v720 = vadd.f32 %v679, %v719
        %721 = vmatmul.f32.gmra.mxu0 %v400
        %v722 = vpop.f32.mrf.mxu0
        %v723 = vadd.f32 %v682, %v722
        %724 = vmatmul.f32.gmra.mxu0 %v402
        %v725 = vpop.f32.mrf.mxu0
        %v726 = vadd.f32 %v685, %v725
        %727 = vmatmul.f32.gmra.mxu0 %v404
        %v728 = vpop.f32.mrf.mxu0
        %v729 = vadd.f32 %v688, %v728
        %730 = vmatmul.f32.gmra.mxu0 %v406
        %v731 = vpop.f32.mrf.mxu0
        %v732 = vadd.f32 %v691, %v731
        %733 = vmatmul.f32.gmra.mxu0 %v408
        %v734 = vpop.f32.mrf.mxu0
        %v735 = vadd.f32 %v694, %v734
        %736 = vmatmul.f32.gmra.mxu0 %v410
        %v737 = vpop.f32.mrf.mxu0
        %v738 = vadd.f32 %v697, %v737
        %739 = vmatmul.f32.gmra.mxu0 %v412
        %v740 = vpop.f32.mrf.mxu0
        %v741 = vadd.f32 %v700, %v740
        %742 = vdwg.mxu0
        %v743 = vmul.f32 %v496, 0.25
        %v744 = vmul.f32 %v499, 0.25
        %v745 = vmul.f32 %v502, 0.25
        %v746 = vmul.f32 %v505, 0.25
        %vm747 = vcmask 130048
        %v749 = vsel %vm747, %v743, 0
        %v752 = vsel %vm747, %v602, 0
        %v755 = vsel %vm747, %v605, 0
        %757 = vmatpush.xpose.msra.mxu0 0.0
        %758 = vmatpush.xpose.msra.mxu0 0.0
        %759 = vmatpush.xpose.msra.mxu0 0.0
        %760 = vmatpush.xpose.msra.mxu0 0.0
        %761 = vmatpush.xpose.msra.mxu0 0.0
        %762 = vmatpush.xpose.msra.mxu0 0.0
        %763 = vmatpush.xpose.msra.mxu0 0.0
        %764 = vmatpush.xpose.msra.mxu0 0.0
        %765 = vmatpush.xpose.msra.mxu0 0.0
        %766 = vmatpush.xpose.msra.mxu0 0.0
        %767 = vmatpush.xpose.msra.mxu0 0.0
        %768 = vmatpush.xpose.msra.mxu0 0.0
        %769 = vmatpush.xpose.msra.mxu0 0.0
        %770 = vmatpush.xpose.msra.mxu0 0.0
        %771 = vmatpush.xpose.msra.mxu0 %v755
        %772 = vmatpush.xpose.msra.mxu0 %v752
        %773 = vmatmul.f32.gmra.mxu0 %v749
        %v774 = vpop.f32.mrf.mxu0
        %v775 = vadd.f32 0.0, %v774
        %776 = vdwg.mxu0
        %v778 = vsel %vm747, %v744, 0
        %v781 = vsel %vm747, %v608, 0
        %v784 = vsel %vm747, %v611, 0
        %786 = vmatpush.xpose.msra.mxu0 0.0
        %787 = vmatpush.xpose.msra.mxu0 0.0
        %788 = vmatpush.xpose.msra.mxu0 0.0
        %789 = vmatpush.xpose.msra.mxu0 0.0
        %790 = vmatpush.xpose.msra.mxu0 0.0
        %791 = vmatpush.xpose.msra.mxu0 0.0
        %792 = vmatpush.xpose.msra.mxu0 0.0
        %793 = vmatpush.xpose.msra.mxu0 0.0
        %794 = vmatpush.xpose.msra.mxu0 0.0
        %795 = vmatpush.xpose.msra.mxu0 0.0
        %796 = vmatpush.xpose.msra.mxu0 0.0
        %797 = vmatpush.xpose.msra.mxu0 0.0
        %798 = vmatpush.xpose.msra.mxu0 0.0
        %799 = vmatpush.xpose.msra.mxu0 0.0
        %800 = vmatpush.xpose.msra.mxu0 %v784
        %801 = vmatpush.xpose.msra.mxu0 %v781
        %802 = vmatmul.f32.gmra.mxu0 %v778
        %v803 = vpop.f32.mrf.mxu0
        %v804 = vadd.f32 0.0, %v803
        %805 = vdwg.mxu0
        %v807 = vsel %vm747, %v745, 0
        %v810 = vsel %vm747, %v614, 0
        %v813 = vsel %vm747, %v617, 0
        %815 = vmatpush.xpose.msra.mxu0 0.0
        %816 = vmatpush.xpose.msra.mxu0 0.0
        %817 = vmatpush.xpose.msra.mxu0 0.0
        %818 = vmatpush.xpose.msra.mxu0 0.0
        %819 = vmatpush.xpose.msra.mxu0 0.0
        %820 = vmatpush.xpose.msra.mxu0 0.0
        %821 = vmatpush.xpose.msra.mxu0 0.0
        %822 = vmatpush.xpose.msra.mxu0 0.0
        %823 = vmatpush.xpose.msra.mxu0 0.0
        %824 = vmatpush.xpose.msra.mxu0 0.0
        %825 = vmatpush.xpose.msra.mxu0 0.0
        %826 = vmatpush.xpose.msra.mxu0 0.0
        %827 = vmatpush.xpose.msra.mxu0 0.0
        %828 = vmatpush.xpose.msra.mxu0 0.0
        %829 = vmatpush.xpose.msra.mxu0 %v813
        %830 = vmatpush.xpose.msra.mxu0 %v810
        %831 = vmatmul.f32.gmra.mxu0 %v807
        %v832 = vpop.f32.mrf.mxu0
        %v833 = vadd.f32 0.0, %v832
        %834 = vdwg.mxu0
        %v836 = vsel %vm747, %v746, 0
        %v839 = vsel %vm747, %v620, 0
        %v842 = vsel %vm747, %v623, 0
        %844 = vmatpush.xpose.msra.mxu0 0.0
        %845 = vmatpush.xpose.msra.mxu0 0.0
        %846 = vmatpush.xpose.msra.mxu0 0.0
        %847 = vmatpush.xpose.msra.mxu0 0.0
        %848 = vmatpush.xpose.msra.mxu0 0.0
        %849 = vmatpush.xpose.msra.mxu0 0.0
        %850 = vmatpush.xpose.msra.mxu0 0.0
        %851 = vmatpush.xpose.msra.mxu0 0.0
        %852 = vmatpush.xpose.msra.mxu0 0.0
        %853 = vmatpush.xpose.msra.mxu0 0.0
        %854 = vmatpush.xpose.msra.mxu0 0.0
        %855 = vmatpush.xpose.msra.mxu0 0.0
        %856 = vmatpush.xpose.msra.mxu0 0.0
        %857 = vmatpush.xpose.msra.mxu0 0.0
        %858 = vmatpush.xpose.msra.mxu0 %v842
        %859 = vmatpush.xpose.msra.mxu0 %v839
        %860 = vmatmul.f32.gmra.mxu0 %v836
        %v861 = vpop.f32.mrf.mxu0
        %v862 = vadd.f32 0.0, %v861
        %863 = vdwg.mxu0
        %v864 = vsel %vm747, %v775, -inf
        %865 = vmax.xlane.f32.xlu0 %v864
        %v866 = vpop.xlane.xlu0 %865
        %v867 = vsel %vm747, %v804, -inf
        %868 = vmax.xlane.f32.xlu0 %v867
        %v869 = vpop.xlane.xlu0 %868
        %v870 = vsel %vm747, %v833, -inf
        %871 = vmax.xlane.f32.xlu0 %v870
        %v872 = vpop.xlane.xlu0 %871
        %v873 = vsel %vm747, %v862, -inf
        %874 = vmax.xlane.f32.xlu0 %v873
        %v875 = vpop.xlane.xlu0 %874
        %v876 = vsub.f32 %v775, %v866
        %v877 = vsub.f32 %v804, %v869
        %v878 = vsub.f32 %v833, %v872
        %v879 = vsub.f32 %v862, %v875
        %v880 = vmul.f32 %v876, 1.442695
        %v881 = vpow.pop %v880
        %v882 = vmul.f32 %v877, 1.442695
        %v883 = vpow.pop %v882
        %v884 = vmul.f32 %v878, 1.442695
        %v885 = vpow.pop %v884
        %v886 = vmul.f32 %v879, 1.442695
        %v887 = vpow.pop %v886
        %v888 = vsel %vm747, %v881, 0.0
        %889 = vadd.xlane.f32.xlu0 %v888
        %v890 = vpop.xlane.xlu0 %889
        %v891 = vsel %vm747, %v883, 0.0
        %892 = vadd.xlane.f32.xlu0 %v891
        %v893 = vpop.xlane.xlu0 %892
        %v894 = vsel %vm747, %v885, 0.0
        %895 = vadd.xlane.f32.xlu0 %v894
        %v896 = vpop.xlane.xlu0 %895
        %v897 = vsel %vm747, %v887, 0.0
        %898 = vadd.xlane.f32.xlu0 %v897
        %v899 = vpop.xlane.xlu0 %898
        %v900 = vrcp.pop %v890
        %v901 = vmul.f32 %v890, %v900
        %v902 = vsub.f32 1.0, %v901
        %v903 = vmul.f32 %v900, %v902
        %v904 = vadd.f32 %v900, %v903
        %vm905 = vweird.f32 %v890
        %vm906 = vweird.f32 %v900
        %vm907 = vmor %vm905, %vm906
        %v908 = vsel %vm907, %v900, %v904
        %v909 = vand.u32 2147483647, %v890
        %vm910 = vcmp.eq.f32.partialorder %v909, 8.507059e+37
        %v911 = vand.u32 %v890, 2147483648
        %v912 = vor.u32 1.1754944e-38, %v911
        %v913 = vsel %vm910, %v912, %v908
        %v914 = vrcp.pop %v893
        %v915 = vmul.f32 %v893, %v914
        %v916 = vsub.f32 1.0, %v915
        %v917 = vmul.f32 %v914, %v916
        %v918 = vadd.f32 %v914, %v917
        %vm919 = vweird.f32 %v893
        %vm920 = vweird.f32 %v914
        %vm921 = vmor %vm919, %vm920
        %v922 = vsel %vm921, %v914, %v918
        %v923 = vand.u32 2147483647, %v893
        %vm924 = vcmp.eq.f32.partialorder %v923, 8.507059e+37
        %v925 = vand.u32 %v893, 2147483648
        %v926 = vor.u32 1.1754944e-38, %v925
        %v927 = vsel %vm924, %v926, %v922
        %v928 = vrcp.pop %v896
        %v929 = vmul.f32 %v896, %v928
        %v930 = vsub.f32 1.0, %v929
        %v931 = vmul.f32 %v928, %v930
        %v932 = vadd.f32 %v928, %v931
        %vm933 = vweird.f32 %v896
        %vm934 = vweird.f32 %v928
        %vm935 = vmor %vm933, %vm934
        %v936 = vsel %vm935, %v928, %v932
        %v937 = vand.u32 2147483647, %v896
        %vm938 = vcmp.eq.f32.partialorder %v937, 8.507059e+37
        %v939 = vand.u32 %v896, 2147483648
        %v940 = vor.u32 1.1754944e-38, %v939
        %v941 = vsel %vm938, %v940, %v936
        %v942 = vrcp.pop %v899
        %v943 = vmul.f32 %v899, %v942
        %v944 = vsub.f32 1.0, %v943
        %v945 = vmul.f32 %v942, %v944
        %v946 = vadd.f32 %v942, %v945
        %vm947 = vweird.f32 %v899
        %vm948 = vweird.f32 %v942
        %vm949 = vmor %vm947, %vm948
        %v950 = vsel %vm949, %v942, %v946
        %v951 = vand.u32 2147483647, %v899
        %vm952 = vcmp.eq.f32.partialorder %v951, 8.507059e+37
        %v953 = vand.u32 %v899, 2147483648
        %v954 = vor.u32 1.1754944e-38, %v953
        %v955 = vsel %vm952, %v954, %v950
        %v956 = vmul.f32 %v881, %v913
        %v957 = vmul.f32 %v883, %v927
        %v958 = vmul.f32 %v885, %v941
        %v959 = vmul.f32 %v887, %v955
        %v961 = vsel %vm747, %v956, 0
        %963 = vmatpush.msra.mxu0 0.0
        %964 = vmatpush.msra.mxu0 0.0
        %965 = vmatpush.msra.mxu0 0.0
        %966 = vmatpush.msra.mxu0 0.0
        %967 = vmatpush.msra.mxu0 0.0
        %968 = vmatpush.msra.mxu0 0.0
        %969 = vmatpush.msra.mxu0 0.0
        %970 = vmatpush.msra.mxu0 0.0
        %971 = vmatpush.msra.mxu0 0.0
        %972 = vmatpush.msra.mxu0 0.0
        %973 = vmatpush.msra.mxu0 0.0
        %974 = vmatpush.msra.mxu0 0.0
        %975 = vmatpush.msra.mxu0 0.0
        %976 = vmatpush.msra.mxu0 0.0
        %977 = vmatpush.msra.mxu0 %v723
        %978 = vmatpush.msra.mxu0 %v720
        %979 = vmatmul.f32.gmra.mxu0 %v961
        %v980 = vpop.f32.mrf.mxu0
        %v981 = vadd.f32 0.0, %v980
        %982 = vdwg.mxu0
        %v984 = vsel %vm747, %v957, 0
        %986 = vmatpush.msra.mxu0 0.0
        %987 = vmatpush.msra.mxu0 0.0
        %988 = vmatpush.msra.mxu0 0.0
        %989 = vmatpush.msra.mxu0 0.0
        %990 = vmatpush.msra.mxu0 0.0
        %991 = vmatpush.msra.mxu0 0.0
        %992 = vmatpush.msra.mxu0 0.0
        %993 = vmatpush.msra.mxu0 0.0
        %994 = vmatpush.msra.mxu0 0.0
        %995 = vmatpush.msra.mxu0 0.0
        %996 = vmatpush.msra.mxu0 0.0
        %997 = vmatpush.msra.mxu0 0.0
        %998 = vmatpush.msra.mxu0 0.0
        %999 = vmatpush.msra.mxu0 0.0
        %1000 = vmatpush.msra.mxu0 %v729
        %1001 = vmatpush.msra.mxu0 %v726
        %1002 = vmatmul.f32.gmra.mxu0 %v984
        %v1003 = vpop.f32.mrf.mxu0
        %v1004 = vadd.f32 0.0, %v1003
        %1005 = vdwg.mxu0
        %v1007 = vsel %vm747, %v958, 0
        %1009 = vmatpush.msra.mxu0 0.0
        %1010 = vmatpush.msra.mxu0 0.0
        %1011 = vmatpush.msra.mxu0 0.0
        %1012 = vmatpush.msra.mxu0 0.0
        %1013 = vmatpush.msra.mxu0 0.0
        %1014 = vmatpush.msra.mxu0 0.0
        %1015 = vmatpush.msra.mxu0 0.0
        %1016 = vmatpush.msra.mxu0 0.0
        %1017 = vmatpush.msra.mxu0 0.0
        %1018 = vmatpush.msra.mxu0 0.0
        %1019 = vmatpush.msra.mxu0 0.0
        %1020 = vmatpush.msra.mxu0 0.0
        %1021 = vmatpush.msra.mxu0 0.0
        %1022 = vmatpush.msra.mxu0 0.0
        %1023 = vmatpush.msra.mxu0 %v735
        %1024 = vmatpush.msra.mxu0 %v732
        %1025 = vmatmul.f32.gmra.mxu0 %v1007
        %v1026 = vpop.f32.mrf.mxu0
        %v1027 = vadd.f32 0.0, %v1026
        %1028 = vdwg.mxu0
        %v1030 = vsel %vm747, %v959, 0
        %1032 = vmatpush.msra.mxu0 0.0
        %1033 = vmatpush.msra.mxu0 0.0
        %1034 = vmatpush.msra.mxu0 0.0
        %1035 = vmatpush.msra.mxu0 0.0
        %1036 = vmatpush.msra.mxu0 0.0
        %1037 = vmatpush.msra.mxu0 0.0
        %1038 = vmatpush.msra.mxu0 0.0
        %1039 = vmatpush.msra.mxu0 0.0
        %1040 = vmatpush.msra.mxu0 0.0
        %1041 = vmatpush.msra.mxu0 0.0
        %1042 = vmatpush.msra.mxu0 0.0
        %1043 = vmatpush.msra.mxu0 0.0
        %1044 = vmatpush.msra.mxu0 0.0
        %1045 = vmatpush.msra.mxu0 0.0
        %1046 = vmatpush.msra.mxu0 %v741
        %1047 = vmatpush.msra.mxu0 %v738
        %1048 = vmatmul.f32.gmra.mxu0 %v1030
        %v1049 = vpop.f32.mrf.mxu0
        %v1050 = vadd.f32 0.0, %v1049
        %1051 = vdwg.mxu0
        %1052 = vst.msk [vmem:[#allocation2] sm:$0xff] %vm747, %v981
        %1053 = vst.msk [vmem:[#allocation2 + $0x8] sm:$0xff] %vm747, %v1004
        %1054 = vst.msk [vmem:[#allocation2 + $0x10] sm:$0xff] %vm747, %v1027
        %1055 = vst.msk [vmem:[#allocation2 + $0x18] sm:$0xff] %vm747, %v1050
        %1056 = vrot.lane.b32.xlu0 %v743, 112
        %v1057 = vpop.permute.xlu0 %1056
        %1058 = vrot.lane.b32.xlu0 %v602, 112
        %v1059 = vpop.permute.xlu0 %1058
        %1060 = vrot.lane.b32.xlu0 %v605, 112
        %v1061 = vpop.permute.xlu0 %1060
        %v1062 = vsel %vm747, %v1057, 0
        %v1064 = vsel %vm747, %v1059, 0
        %v1066 = vsel %vm747, %v1061, 0
        %1068 = vmatpush.xpose.msra.mxu0 0.0
        %1069 = vmatpush.xpose.msra.mxu0 0.0
        %1070 = vmatpush.xpose.msra.mxu0 0.0
        %1071 = vmatpush.xpose.msra.mxu0 0.0
        %1072 = vmatpush.xpose.msra.mxu0 0.0
        %1073 = vmatpush.xpose.msra.mxu0 0.0
        %1074 = vmatpush.xpose.msra.mxu0 0.0
        %1075 = vmatpush.xpose.msra.mxu0 0.0
        %1076 = vmatpush.xpose.msra.mxu0 0.0
        %1077 = vmatpush.xpose.msra.mxu0 0.0
        %1078 = vmatpush.xpose.msra.mxu0 0.0
        %1079 = vmatpush.xpose.msra.mxu0 0.0
        %1080 = vmatpush.xpose.msra.mxu0 0.0
        %1081 = vmatpush.xpose.msra.mxu0 0.0
        %1082 = vmatpush.xpose.msra.mxu0 %v1066
        %1083 = vmatpush.xpose.msra.mxu0 %v1064
        %1084 = vmatmul.f32.gmra.mxu0 %v1062
        %v1085 = vpop.f32.mrf.mxu0
        %v1086 = vadd.f32 0.0, %v1085
        %1087 = vdwg.mxu0
        %1088 = vrot.lane.b32.xlu0 %v744, 112
        %v1089 = vpop.permute.xlu0 %1088
        %1090 = vrot.lane.b32.xlu0 %v608, 112
        %v1091 = vpop.permute.xlu0 %1090
        %1092 = vrot.lane.b32.xlu0 %v611, 112
        %v1093 = vpop.permute.xlu0 %1092
        %v1094 = vsel %vm747, %v1089, 0
        %v1096 = vsel %vm747, %v1091, 0
        %v1098 = vsel %vm747, %v1093, 0
        %1100 = vmatpush.xpose.msra.mxu0 0.0
        %1101 = vmatpush.xpose.msra.mxu0 0.0
        %1102 = vmatpush.xpose.msra.mxu0 0.0
        %1103 = vmatpush.xpose.msra.mxu0 0.0
        %1104 = vmatpush.xpose.msra.mxu0 0.0
        %1105 = vmatpush.xpose.msra.mxu0 0.0
        %1106 = vmatpush.xpose.msra.mxu0 0.0
        %1107 = vmatpush.xpose.msra.mxu0 0.0
        %1108 = vmatpush.xpose.msra.mxu0 0.0
        %1109 = vmatpush.xpose.msra.mxu0 0.0
        %1110 = vmatpush.xpose.msra.mxu0 0.0
        %1111 = vmatpush.xpose.msra.mxu0 0.0
        %1112 = vmatpush.xpose.msra.mxu0 0.0
        %1113 = vmatpush.xpose.msra.mxu0 0.0
        %1114 = vmatpush.xpose.msra.mxu0 %v1098
        %1115 = vmatpush.xpose.msra.mxu0 %v1096
        %1116 = vmatmul.f32.gmra.mxu0 %v1094
        %v1117 = vpop.f32.mrf.mxu0
        %v1118 = vadd.f32 0.0, %v1117
        %1119 = vdwg.mxu0
        %1120 = vrot.lane.b32.xlu0 %v745, 112
        %v1121 = vpop.permute.xlu0 %1120
        %1122 = vrot.lane.b32.xlu0 %v614, 112
        %v1123 = vpop.permute.xlu0 %1122
        %1124 = vrot.lane.b32.xlu0 %v617, 112
        %v1125 = vpop.permute.xlu0 %1124
        %v1126 = vsel %vm747, %v1121, 0
        %v1128 = vsel %vm747, %v1123, 0
        %v1130 = vsel %vm747, %v1125, 0
        %1132 = vmatpush.xpose.msra.mxu0 0.0
        %1133 = vmatpush.xpose.msra.mxu0 0.0
        %1134 = vmatpush.xpose.msra.mxu0 0.0
        %1135 = vmatpush.xpose.msra.mxu0 0.0
        %1136 = vmatpush.xpose.msra.mxu0 0.0
        %1137 = vmatpush.xpose.msra.mxu0 0.0
        %1138 = vmatpush.xpose.msra.mxu0 0.0
        %1139 = vmatpush.xpose.msra.mxu0 0.0
        %1140 = vmatpush.xpose.msra.mxu0 0.0
        %1141 = vmatpush.xpose.msra.mxu0 0.0
        %1142 = vmatpush.xpose.msra.mxu0 0.0
        %1143 = vmatpush.xpose.msra.mxu0 0.0
        %1144 = vmatpush.xpose.msra.mxu0 0.0
        %1145 = vmatpush.xpose.msra.mxu0 0.0
        %1146 = vmatpush.xpose.msra.mxu0 %v1130
        %1147 = vmatpush.xpose.msra.mxu0 %v1128
        %1148 = vmatmul.f32.gmra.mxu0 %v1126
        %v1149 = vpop.f32.mrf.mxu0
        %v1150 = vadd.f32 0.0, %v1149
        %1151 = vdwg.mxu0
        %1152 = vrot.lane.b32.xlu0 %v746, 112
        %v1153 = vpop.permute.xlu0 %1152
        %1154 = vrot.lane.b32.xlu0 %v620, 112
        %v1155 = vpop.permute.xlu0 %1154
        %1156 = vrot.lane.b32.xlu0 %v623, 112
        %v1157 = vpop.permute.xlu0 %1156
        %v1158 = vsel %vm747, %v1153, 0
        %v1160 = vsel %vm747, %v1155, 0
        %v1162 = vsel %vm747, %v1157, 0
        %1164 = vmatpush.xpose.msra.mxu0 0.0
        %1165 = vmatpush.xpose.msra.mxu0 0.0
        %1166 = vmatpush.xpose.msra.mxu0 0.0
        %1167 = vmatpush.xpose.msra.mxu0 0.0
        %1168 = vmatpush.xpose.msra.mxu0 0.0
        %1169 = vmatpush.xpose.msra.mxu0 0.0
        %1170 = vmatpush.xpose.msra.mxu0 0.0
        %1171 = vmatpush.xpose.msra.mxu0 0.0
        %1172 = vmatpush.xpose.msra.mxu0 0.0
        %1173 = vmatpush.xpose.msra.mxu0 0.0
        %1174 = vmatpush.xpose.msra.mxu0 0.0
        %1175 = vmatpush.xpose.msra.mxu0 0.0
        %1176 = vmatpush.xpose.msra.mxu0 0.0
        %1177 = vmatpush.xpose.msra.mxu0 0.0
        %1178 = vmatpush.xpose.msra.mxu0 %v1162
        %1179 = vmatpush.xpose.msra.mxu0 %v1160
        %1180 = vmatmul.f32.gmra.mxu0 %v1158
        %v1181 = vpop.f32.mrf.mxu0
        %v1182 = vadd.f32 0.0, %v1181
        %1183 = vdwg.mxu0
        %v1184 = vsel %vm747, %v1086, -inf
        %1185 = vmax.xlane.f32.xlu0 %v1184
        %v1186 = vpop.xlane.xlu0 %1185
        %v1187 = vsel %vm747, %v1118, -inf
        %1188 = vmax.xlane.f32.xlu0 %v1187
        %v1189 = vpop.xlane.xlu0 %1188
        %v1190 = vsel %vm747, %v1150, -inf
        %1191 = vmax.xlane.f32.xlu0 %v1190
        %v1192 = vpop.xlane.xlu0 %1191
        %v1193 = vsel %vm747, %v1182, -inf
        %1194 = vmax.xlane.f32.xlu0 %v1193
        %v1195 = vpop.xlane.xlu0 %1194
        %v1196 = vsub.f32 %v1086, %v1186
        %v1197 = vsub.f32 %v1118, %v1189
        %v1198 = vsub.f32 %v1150, %v1192
        %v1199 = vsub.f32 %v1182, %v1195
        %v1200 = vmul.f32 %v1196, 1.442695
        %v1201 = vpow.pop %v1200
        %v1202 = vmul.f32 %v1197, 1.442695
        %v1203 = vpow.pop %v1202
        %v1204 = vmul.f32 %v1198, 1.442695
        %v1205 = vpow.pop %v1204
        %v1206 = vmul.f32 %v1199, 1.442695
        %v1207 = vpow.pop %v1206
        %v1208 = vsel %vm747, %v1201, 0.0
        %1209 = vadd.xlane.f32.xlu0 %v1208
        %v1210 = vpop.xlane.xlu0 %1209
        %v1211 = vsel %vm747, %v1203, 0.0
        %1212 = vadd.xlane.f32.xlu0 %v1211
        %v1213 = vpop.xlane.xlu0 %1212
        %v1214 = vsel %vm747, %v1205, 0.0
        %1215 = vadd.xlane.f32.xlu0 %v1214
        %v1216 = vpop.xlane.xlu0 %1215
        %v1217 = vsel %vm747, %v1207, 0.0
        %1218 = vadd.xlane.f32.xlu0 %v1217
        %v1219 = vpop.xlane.xlu0 %1218
        %v1220 = vrcp.pop %v1210
        %v1221 = vmul.f32 %v1210, %v1220
        %v1222 = vsub.f32 1.0, %v1221
        %v1223 = vmul.f32 %v1220, %v1222
        %v1224 = vadd.f32 %v1220, %v1223
        %vm1225 = vweird.f32 %v1210
        %vm1226 = vweird.f32 %v1220
        %vm1227 = vmor %vm1225, %vm1226
        %v1228 = vsel %vm1227, %v1220, %v1224
        %v1229 = vand.u32 2147483647, %v1210
        %vm1230 = vcmp.eq.f32.partialorder %v1229, 8.507059e+37
        %v1231 = vand.u32 %v1210, 2147483648
        %v1232 = vor.u32 1.1754944e-38, %v1231
        %v1233 = vsel %vm1230, %v1232, %v1228
        %v1234 = vrcp.pop %v1213
        %v1235 = vmul.f32 %v1213, %v1234
        %v1236 = vsub.f32 1.0, %v1235
        %v1237 = vmul.f32 %v1234, %v1236
        %v1238 = vadd.f32 %v1234, %v1237
        %vm1239 = vweird.f32 %v1213
        %vm1240 = vweird.f32 %v1234
        %vm1241 = vmor %vm1239, %vm1240
        %v1242 = vsel %vm1241, %v1234, %v1238
        %v1243 = vand.u32 2147483647, %v1213
        %vm1244 = vcmp.eq.f32.partialorder %v1243, 8.507059e+37
        %v1245 = vand.u32 %v1213, 2147483648
        %v1246 = vor.u32 1.1754944e-38, %v1245
        %v1247 = vsel %vm1244, %v1246, %v1242
        %v1248 = vrcp.pop %v1216
        %v1249 = vmul.f32 %v1216, %v1248
        %v1250 = vsub.f32 1.0, %v1249
        %v1251 = vmul.f32 %v1248, %v1250
        %v1252 = vadd.f32 %v1248, %v1251
        %vm1253 = vweird.f32 %v1216
        %vm1254 = vweird.f32 %v1248
        %vm1255 = vmor %vm1253, %vm1254
        %v1256 = vsel %vm1255, %v1248, %v1252
        %v1257 = vand.u32 2147483647, %v1216
        %vm1258 = vcmp.eq.f32.partialorder %v1257, 8.507059e+37
        %v1259 = vand.u32 %v1216, 2147483648
        %v1260 = vor.u32 1.1754944e-38, %v1259
        %v1261 = vsel %vm1258, %v1260, %v1256
        %v1262 = vrcp.pop %v1219
        %v1263 = vmul.f32 %v1219, %v1262
        %v1264 = vsub.f32 1.0, %v1263
        %v1265 = vmul.f32 %v1262, %v1264
        %v1266 = vadd.f32 %v1262, %v1265
        %vm1267 = vweird.f32 %v1219
        %vm1268 = vweird.f32 %v1262
        %vm1269 = vmor %vm1267, %vm1268
        %v1270 = vsel %vm1269, %v1262, %v1266
        %v1271 = vand.u32 2147483647, %v1219
        %vm1272 = vcmp.eq.f32.partialorder %v1271, 8.507059e+37
        %v1273 = vand.u32 %v1219, 2147483648
        %v1274 = vor.u32 1.1754944e-38, %v1273
        %v1275 = vsel %vm1272, %v1274, %v1270
        %v1276 = vmul.f32 %v1201, %v1233
        %v1277 = vmul.f32 %v1203, %v1247
        %v1278 = vmul.f32 %v1205, %v1261
        %v1279 = vmul.f32 %v1207, %v1275
        %1282 = vrot.lane.b32.xlu0 %v720, 112
        %v1283 = vpop.permute.xlu0 %1282
        %1284 = vrot.lane.b32.xlu0 %v723, 112
        %v1285 = vpop.permute.xlu0 %1284
        %v1289 = vsel %vm747, %v1276, 0
        %1291 = vmatpush.msra.mxu0 0.0
        %1292 = vmatpush.msra.mxu0 0.0
        %1293 = vmatpush.msra.mxu0 0.0
        %1294 = vmatpush.msra.mxu0 0.0
        %1295 = vmatpush.msra.mxu0 0.0
        %1296 = vmatpush.msra.mxu0 0.0
        %1297 = vmatpush.msra.mxu0 0.0
        %1298 = vmatpush.msra.mxu0 0.0
        %1299 = vmatpush.msra.mxu0 0.0
        %1300 = vmatpush.msra.mxu0 0.0
        %1301 = vmatpush.msra.mxu0 0.0
        %1302 = vmatpush.msra.mxu0 0.0
        %1303 = vmatpush.msra.mxu0 0.0
        %1304 = vmatpush.msra.mxu0 0.0
        %1305 = vmatpush.msra.mxu0 %v1285
        %1306 = vmatpush.msra.mxu0 %v1283
        %1307 = vmatmul.f32.gmra.mxu0 %v1289
        %v1308 = vpop.f32.mrf.mxu0
        %v1309 = vadd.f32 0.0, %v1308
        %1310 = vdwg.mxu0
        %1313 = vrot.lane.b32.xlu0 %v726, 112
        %v1314 = vpop.permute.xlu0 %1313
        %1315 = vrot.lane.b32.xlu0 %v729, 112
        %v1316 = vpop.permute.xlu0 %1315
        %v1320 = vsel %vm747, %v1277, 0
        %1322 = vmatpush.msra.mxu0 0.0
        %1323 = vmatpush.msra.mxu0 0.0
        %1324 = vmatpush.msra.mxu0 0.0
        %1325 = vmatpush.msra.mxu0 0.0
        %1326 = vmatpush.msra.mxu0 0.0
        %1327 = vmatpush.msra.mxu0 0.0
        %1328 = vmatpush.msra.mxu0 0.0
        %1329 = vmatpush.msra.mxu0 0.0
        %1330 = vmatpush.msra.mxu0 0.0
        %1331 = vmatpush.msra.mxu0 0.0
        %1332 = vmatpush.msra.mxu0 0.0
        %1333 = vmatpush.msra.mxu0 0.0
        %1334 = vmatpush.msra.mxu0 0.0
        %1335 = vmatpush.msra.mxu0 0.0
        %1336 = vmatpush.msra.mxu0 %v1316
        %1337 = vmatpush.msra.mxu0 %v1314
        %1338 = vmatmul.f32.gmra.mxu0 %v1320
        %v1339 = vpop.f32.mrf.mxu0
        %v1340 = vadd.f32 0.0, %v1339
        %1341 = vdwg.mxu0
        %1344 = vrot.lane.b32.xlu0 %v732, 112
        %v1345 = vpop.permute.xlu0 %1344
        %1346 = vrot.lane.b32.xlu0 %v735, 112
        %v1347 = vpop.permute.xlu0 %1346
        %v1351 = vsel %vm747, %v1278, 0
        %1353 = vmatpush.msra.mxu0 0.0
        %1354 = vmatpush.msra.mxu0 0.0
        %1355 = vmatpush.msra.mxu0 0.0
        %1356 = vmatpush.msra.mxu0 0.0
        %1357 = vmatpush.msra.mxu0 0.0
        %1358 = vmatpush.msra.mxu0 0.0
        %1359 = vmatpush.msra.mxu0 0.0
        %1360 = vmatpush.msra.mxu0 0.0
        %1361 = vmatpush.msra.mxu0 0.0
        %1362 = vmatpush.msra.mxu0 0.0
        %1363 = vmatpush.msra.mxu0 0.0
        %1364 = vmatpush.msra.mxu0 0.0
        %1365 = vmatpush.msra.mxu0 0.0
        %1366 = vmatpush.msra.mxu0 0.0
        %1367 = vmatpush.msra.mxu0 %v1347
        %1368 = vmatpush.msra.mxu0 %v1345
        %1369 = vmatmul.f32.gmra.mxu0 %v1351
        %v1370 = vpop.f32.mrf.mxu0
        %v1371 = vadd.f32 0.0, %v1370
        %1372 = vdwg.mxu0
        %1375 = vrot.lane.b32.xlu0 %v738, 112
        %v1376 = vpop.permute.xlu0 %1375
        %1377 = vrot.lane.b32.xlu0 %v741, 112
        %v1378 = vpop.permute.xlu0 %1377
        %v1382 = vsel %vm747, %v1279, 0
        %1384 = vmatpush.msra.mxu0 0.0
        %1385 = vmatpush.msra.mxu0 0.0
        %1386 = vmatpush.msra.mxu0 0.0
        %1387 = vmatpush.msra.mxu0 0.0
        %1388 = vmatpush.msra.mxu0 0.0
        %1389 = vmatpush.msra.mxu0 0.0
        %1390 = vmatpush.msra.mxu0 0.0
        %1391 = vmatpush.msra.mxu0 0.0
        %1392 = vmatpush.msra.mxu0 0.0
        %1393 = vmatpush.msra.mxu0 0.0
        %1394 = vmatpush.msra.mxu0 0.0
        %1395 = vmatpush.msra.mxu0 0.0
        %1396 = vmatpush.msra.mxu0 0.0
        %1397 = vmatpush.msra.mxu0 0.0
        %1398 = vmatpush.msra.mxu0 %v1378
        %1399 = vmatpush.msra.mxu0 %v1376
        %1400 = vmatmul.f32.gmra.mxu0 %v1382
        %v1401 = vpop.f32.mrf.mxu0
        %v1402 = vadd.f32 0.0, %v1401
        %1403 = vdwg.mxu0
        %1408 = vrot.lane.b32.xlu0 %v1309, 16
        %v1409 = vpop.permute.xlu0 %1408
        %1410 = vrot.lane.b32.xlu0 %v1340, 16
        %v1411 = vpop.permute.xlu0 %1410
        %1412 = vrot.lane.b32.xlu0 %v1371, 16
        %v1413 = vpop.permute.xlu0 %1412
        %1414 = vrot.lane.b32.xlu0 %v1402, 16
        %v1415 = vpop.permute.xlu0 %1414
        %vm1420 = vcmask 261248
        %1421 = vst.msk [vmem:[#allocation2] sm:$0xff] %vm1420, %v1409
        %1422 = vst.msk [vmem:[#allocation2 + $0x8] sm:$0xff] %vm1420, %v1411
        %1423 = vst.msk [vmem:[#allocation2 + $0x10] sm:$0xff] %vm1420, %v1413
        %1424 = vst.msk [vmem:[#allocation2 + $0x18] sm:$0xff] %vm1420, %v1415
        %1425 = vrot.lane.b32.xlu0 %v743, 96
        %v1426 = vpop.permute.xlu0 %1425
        %1427 = vrot.lane.b32.xlu0 %v602, 96
        %v1428 = vpop.permute.xlu0 %1427
        %1429 = vrot.lane.b32.xlu0 %v605, 96
        %v1430 = vpop.permute.xlu0 %1429
        %v1431 = vsel %vm747, %v1426, 0
        %v1433 = vsel %vm747, %v1428, 0
        %v1435 = vsel %vm747, %v1430, 0
        %1437 = vmatpush.xpose.msra.mxu0 0.0
        %1438 = vmatpush.xpose.msra.mxu0 0.0
        %1439 = vmatpush.xpose.msra.mxu0 0.0
        %1440 = vmatpush.xpose.msra.mxu0 0.0
        %1441 = vmatpush.xpose.msra.mxu0 0.0
        %1442 = vmatpush.xpose.msra.mxu0 0.0
        %1443 = vmatpush.xpose.msra.mxu0 0.0
        %1444 = vmatpush.xpose.msra.mxu0 0.0
        %1445 = vmatpush.xpose.msra.mxu0 0.0
        %1446 = vmatpush.xpose.msra.mxu0 0.0
        %1447 = vmatpush.xpose.msra.mxu0 0.0
        %1448 = vmatpush.xpose.msra.mxu0 0.0
        %1449 = vmatpush.xpose.msra.mxu0 0.0
        %1450 = vmatpush.xpose.msra.mxu0 0.0
        %1451 = vmatpush.xpose.msra.mxu0 %v1435
        %1452 = vmatpush.xpose.msra.mxu0 %v1433
        %1453 = vmatmul.f32.gmra.mxu0 %v1431
        %v1454 = vpop.f32.mrf.mxu0
        %v1455 = vadd.f32 0.0, %v1454
        %1456 = vdwg.mxu0
        %1457 = vrot.lane.b32.xlu0 %v744, 96
        %v1458 = vpop.permute.xlu0 %1457
        %1459 = vrot.lane.b32.xlu0 %v608, 96
        %v1460 = vpop.permute.xlu0 %1459
        %1461 = vrot.lane.b32.xlu0 %v611, 96
        %v1462 = vpop.permute.xlu0 %1461
        %v1463 = vsel %vm747, %v1458, 0
        %v1465 = vsel %vm747, %v1460, 0
        %v1467 = vsel %vm747, %v1462, 0
        %1469 = vmatpush.xpose.msra.mxu0 0.0
        %1470 = vmatpush.xpose.msra.mxu0 0.0
        %1471 = vmatpush.xpose.msra.mxu0 0.0
        %1472 = vmatpush.xpose.msra.mxu0 0.0
        %1473 = vmatpush.xpose.msra.mxu0 0.0
        %1474 = vmatpush.xpose.msra.mxu0 0.0
        %1475 = vmatpush.xpose.msra.mxu0 0.0
        %1476 = vmatpush.xpose.msra.mxu0 0.0
        %1477 = vmatpush.xpose.msra.mxu0 0.0
        %1478 = vmatpush.xpose.msra.mxu0 0.0
        %1479 = vmatpush.xpose.msra.mxu0 0.0
        %1480 = vmatpush.xpose.msra.mxu0 0.0
        %1481 = vmatpush.xpose.msra.mxu0 0.0
        %1482 = vmatpush.xpose.msra.mxu0 0.0
        %1483 = vmatpush.xpose.msra.mxu0 %v1467
        %1484 = vmatpush.xpose.msra.mxu0 %v1465
        %1485 = vmatmul.f32.gmra.mxu0 %v1463
        %v1486 = vpop.f32.mrf.mxu0
        %v1487 = vadd.f32 0.0, %v1486
        %1488 = vdwg.mxu0
        %1489 = vrot.lane.b32.xlu0 %v745, 96
        %v1490 = vpop.permute.xlu0 %1489
        %1491 = vrot.lane.b32.xlu0 %v614, 96
        %v1492 = vpop.permute.xlu0 %1491
        %1493 = vrot.lane.b32.xlu0 %v617, 96
        %v1494 = vpop.permute.xlu0 %1493
        %v1495 = vsel %vm747, %v1490, 0
        %v1497 = vsel %vm747, %v1492, 0
        %v1499 = vsel %vm747, %v1494, 0
        %1501 = vmatpush.xpose.msra.mxu0 0.0
        %1502 = vmatpush.xpose.msra.mxu0 0.0
        %1503 = vmatpush.xpose.msra.mxu0 0.0
        %1504 = vmatpush.xpose.msra.mxu0 0.0
        %1505 = vmatpush.xpose.msra.mxu0 0.0
        %1506 = vmatpush.xpose.msra.mxu0 0.0
        %1507 = vmatpush.xpose.msra.mxu0 0.0
        %1508 = vmatpush.xpose.msra.mxu0 0.0
        %1509 = vmatpush.xpose.msra.mxu0 0.0
        %1510 = vmatpush.xpose.msra.mxu0 0.0
        %1511 = vmatpush.xpose.msra.mxu0 0.0
        %1512 = vmatpush.xpose.msra.mxu0 0.0
        %1513 = vmatpush.xpose.msra.mxu0 0.0
        %1514 = vmatpush.xpose.msra.mxu0 0.0
        %1515 = vmatpush.xpose.msra.mxu0 %v1499
        %1516 = vmatpush.xpose.msra.mxu0 %v1497
        %1517 = vmatmul.f32.gmra.mxu0 %v1495
        %v1518 = vpop.f32.mrf.mxu0
        %v1519 = vadd.f32 0.0, %v1518
        %1520 = vdwg.mxu0
        %1521 = vrot.lane.b32.xlu0 %v746, 96
        %v1522 = vpop.permute.xlu0 %1521
        %1523 = vrot.lane.b32.xlu0 %v620, 96
        %v1524 = vpop.permute.xlu0 %1523
        %1525 = vrot.lane.b32.xlu0 %v623, 96
        %v1526 = vpop.permute.xlu0 %1525
        %v1527 = vsel %vm747, %v1522, 0
        %v1529 = vsel %vm747, %v1524, 0
        %v1531 = vsel %vm747, %v1526, 0
        %1533 = vmatpush.xpose.msra.mxu0 0.0
        %1534 = vmatpush.xpose.msra.mxu0 0.0
        %1535 = vmatpush.xpose.msra.mxu0 0.0
        %1536 = vmatpush.xpose.msra.mxu0 0.0
        %1537 = vmatpush.xpose.msra.mxu0 0.0
        %1538 = vmatpush.xpose.msra.mxu0 0.0
        %1539 = vmatpush.xpose.msra.mxu0 0.0
        %1540 = vmatpush.xpose.msra.mxu0 0.0
        %1541 = vmatpush.xpose.msra.mxu0 0.0
        %1542 = vmatpush.xpose.msra.mxu0 0.0
        %1543 = vmatpush.xpose.msra.mxu0 0.0
        %1544 = vmatpush.xpose.msra.mxu0 0.0
        %1545 = vmatpush.xpose.msra.mxu0 0.0
        %1546 = vmatpush.xpose.msra.mxu0 0.0
        %1547 = vmatpush.xpose.msra.mxu0 %v1531
        %1548 = vmatpush.xpose.msra.mxu0 %v1529
        %1549 = vmatmul.f32.gmra.mxu0 %v1527
        %v1550 = vpop.f32.mrf.mxu0
        %v1551 = vadd.f32 0.0, %v1550
        %1552 = vdwg.mxu0
        %v1553 = vsel %vm747, %v1455, -inf
        %1554 = vmax.xlane.f32.xlu0 %v1553
        %v1555 = vpop.xlane.xlu0 %1554
        %v1556 = vsel %vm747, %v1487, -inf
        %1557 = vmax.xlane.f32.xlu0 %v1556
        %v1558 = vpop.xlane.xlu0 %1557
        %v1559 = vsel %vm747, %v1519, -inf
        %1560 = vmax.xlane.f32.xlu0 %v1559
        %v1561 = vpop.xlane.xlu0 %1560
        %v1562 = vsel %vm747, %v1551, -inf
        %1563 = vmax.xlane.f32.xlu0 %v1562
        %v1564 = vpop.xlane.xlu0 %1563
        %v1565 = vsub.f32 %v1455, %v1555
        %v1566 = vsub.f32 %v1487, %v1558
        %v1567 = vsub.f32 %v1519, %v1561
        %v1568 = vsub.f32 %v1551, %v1564
        %v1569 = vmul.f32 %v1565, 1.442695
        %v1570 = vpow.pop %v1569
        %v1571 = vmul.f32 %v1566, 1.442695
        %v1572 = vpow.pop %v1571
        %v1573 = vmul.f32 %v1567, 1.442695
        %v1574 = vpow.pop %v1573
        %v1575 = vmul.f32 %v1568, 1.442695
        %v1576 = vpow.pop %v1575
        %v1577 = vsel %vm747, %v1570, 0.0
        %1578 = vadd.xlane.f32.xlu0 %v1577
        %v1579 = vpop.xlane.xlu0 %1578
        %v1580 = vsel %vm747, %v1572, 0.0
        %1581 = vadd.xlane.f32.xlu0 %v1580
        %v1582 = vpop.xlane.xlu0 %1581
        %v1583 = vsel %vm747, %v1574, 0.0
        %1584 = vadd.xlane.f32.xlu0 %v1583
        %v1585 = vpop.xlane.xlu0 %1584
        %v1586 = vsel %vm747, %v1576, 0.0
        %1587 = vadd.xlane.f32.xlu0 %v1586
        %v1588 = vpop.xlane.xlu0 %1587
        %v1589 = vrcp.pop %v1579
        %v1590 = vmul.f32 %v1579, %v1589
        %v1591 = vsub.f32 1.0, %v1590
        %v1592 = vmul.f32 %v1589, %v1591
        %v1593 = vadd.f32 %v1589, %v1592
        %vm1594 = vweird.f32 %v1579
        %vm1595 = vweird.f32 %v1589
        %vm1596 = vmor %vm1594, %vm1595
        %v1597 = vsel %vm1596, %v1589, %v1593
        %v1598 = vand.u32 2147483647, %v1579
        %vm1599 = vcmp.eq.f32.partialorder %v1598, 8.507059e+37
        %v1600 = vand.u32 %v1579, 2147483648
        %v1601 = vor.u32 1.1754944e-38, %v1600
        %v1602 = vsel %vm1599, %v1601, %v1597
        %v1603 = vrcp.pop %v1582
        %v1604 = vmul.f32 %v1582, %v1603
        %v1605 = vsub.f32 1.0, %v1604
        %v1606 = vmul.f32 %v1603, %v1605
        %v1607 = vadd.f32 %v1603, %v1606
        %vm1608 = vweird.f32 %v1582
        %vm1609 = vweird.f32 %v1603
        %vm1610 = vmor %vm1608, %vm1609
        %v1611 = vsel %vm1610, %v1603, %v1607
        %v1612 = vand.u32 2147483647, %v1582
        %vm1613 = vcmp.eq.f32.partialorder %v1612, 8.507059e+37
        %v1614 = vand.u32 %v1582, 2147483648
        %v1615 = vor.u32 1.1754944e-38, %v1614
        %v1616 = vsel %vm1613, %v1615, %v1611
        %v1617 = vrcp.pop %v1585
        %v1618 = vmul.f32 %v1585, %v1617
        %v1619 = vsub.f32 1.0, %v1618
        %v1620 = vmul.f32 %v1617, %v1619
        %v1621 = vadd.f32 %v1617, %v1620
        %vm1622 = vweird.f32 %v1585
        %vm1623 = vweird.f32 %v1617
        %vm1624 = vmor %vm1622, %vm1623
        %v1625 = vsel %vm1624, %v1617, %v1621
        %v1626 = vand.u32 2147483647, %v1585
        %vm1627 = vcmp.eq.f32.partialorder %v1626, 8.507059e+37
        %v1628 = vand.u32 %v1585, 2147483648
        %v1629 = vor.u32 1.1754944e-38, %v1628
        %v1630 = vsel %vm1627, %v1629, %v1625
        %v1631 = vrcp.pop %v1588
        %v1632 = vmul.f32 %v1588, %v1631
        %v1633 = vsub.f32 1.0, %v1632
        %v1634 = vmul.f32 %v1631, %v1633
        %v1635 = vadd.f32 %v1631, %v1634
        %vm1636 = vweird.f32 %v1588
        %vm1637 = vweird.f32 %v1631
        %vm1638 = vmor %vm1636, %vm1637
        %v1639 = vsel %vm1638, %v1631, %v1635
        %v1640 = vand.u32 2147483647, %v1588
        %vm1641 = vcmp.eq.f32.partialorder %v1640, 8.507059e+37
        %v1642 = vand.u32 %v1588, 2147483648
        %v1643 = vor.u32 1.1754944e-38, %v1642
        %v1644 = vsel %vm1641, %v1643, %v1639
        %v1645 = vmul.f32 %v1570, %v1602
        %v1646 = vmul.f32 %v1572, %v1616
        %v1647 = vmul.f32 %v1574, %v1630
        %v1648 = vmul.f32 %v1576, %v1644
        %1649 = vrot.lane.b32.xlu0 %v720, 96
        %v1650 = vpop.permute.xlu0 %1649
        %1651 = vrot.lane.b32.xlu0 %v723, 96
        %v1652 = vpop.permute.xlu0 %1651
        %v1656 = vsel %vm747, %v1645, 0
        %1658 = vmatpush.msra.mxu0 0.0
        %1659 = vmatpush.msra.mxu0 0.0
        %1660 = vmatpush.msra.mxu0 0.0
        %1661 = vmatpush.msra.mxu0 0.0
        %1662 = vmatpush.msra.mxu0 0.0
        %1663 = vmatpush.msra.mxu0 0.0
        %1664 = vmatpush.msra.mxu0 0.0
        %1665 = vmatpush.msra.mxu0 0.0
        %1666 = vmatpush.msra.mxu0 0.0
        %1667 = vmatpush.msra.mxu0 0.0
        %1668 = vmatpush.msra.mxu0 0.0
        %1669 = vmatpush.msra.mxu0 0.0
        %1670 = vmatpush.msra.mxu0 0.0
        %1671 = vmatpush.msra.mxu0 0.0
        %1672 = vmatpush.msra.mxu0 %v1652
        %1673 = vmatpush.msra.mxu0 %v1650
        %1674 = vmatmul.f32.gmra.mxu0 %v1656
        %v1675 = vpop.f32.mrf.mxu0
        %v1676 = vadd.f32 0.0, %v1675
        %1677 = vdwg.mxu0
        %1678 = vrot.lane.b32.xlu0 %v726, 96
        %v1679 = vpop.permute.xlu0 %1678
        %1680 = vrot.lane.b32.xlu0 %v729, 96
        %v1681 = vpop.permute.xlu0 %1680
        %v1685 = vsel %vm747, %v1646, 0
        %1687 = vmatpush.msra.mxu0 0.0
        %1688 = vmatpush.msra.mxu0 0.0
        %1689 = vmatpush.msra.mxu0 0.0
        %1690 = vmatpush.msra.mxu0 0.0
        %1691 = vmatpush.msra.mxu0 0.0
        %1692 = vmatpush.msra.mxu0 0.0
        %1693 = vmatpush.msra.mxu0 0.0
        %1694 = vmatpush.msra.mxu0 0.0
        %1695 = vmatpush.msra.mxu0 0.0
        %1696 = vmatpush.msra.mxu0 0.0
        %1697 = vmatpush.msra.mxu0 0.0
        %1698 = vmatpush.msra.mxu0 0.0
        %1699 = vmatpush.msra.mxu0 0.0
        %1700 = vmatpush.msra.mxu0 0.0
        %1701 = vmatpush.msra.mxu0 %v1681
        %1702 = vmatpush.msra.mxu0 %v1679
        %1703 = vmatmul.f32.gmra.mxu0 %v1685
        %v1704 = vpop.f32.mrf.mxu0
        %v1705 = vadd.f32 0.0, %v1704
        %1706 = vdwg.mxu0
        %1707 = vrot.lane.b32.xlu0 %v732, 96
        %v1708 = vpop.permute.xlu0 %1707
        %1709 = vrot.lane.b32.xlu0 %v735, 96
        %v1710 = vpop.permute.xlu0 %1709
        %v1714 = vsel %vm747, %v1647, 0
        %1716 = vmatpush.msra.mxu0 0.0
        %1717 = vmatpush.msra.mxu0 0.0
        %1718 = vmatpush.msra.mxu0 0.0
        %1719 = vmatpush.msra.mxu0 0.0
        %1720 = vmatpush.msra.mxu0 0.0
        %1721 = vmatpush.msra.mxu0 0.0
        %1722 = vmatpush.msra.mxu0 0.0
        %1723 = vmatpush.msra.mxu0 0.0
        %1724 = vmatpush.msra.mxu0 0.0
        %1725 = vmatpush.msra.mxu0 0.0
        %1726 = vmatpush.msra.mxu0 0.0
        %1727 = vmatpush.msra.mxu0 0.0
        %1728 = vmatpush.msra.mxu0 0.0
        %1729 = vmatpush.msra.mxu0 0.0
        %1730 = vmatpush.msra.mxu0 %v1710
        %1731 = vmatpush.msra.mxu0 %v1708
        %1732 = vmatmul.f32.gmra.mxu0 %v1714
        %v1733 = vpop.f32.mrf.mxu0
        %v1734 = vadd.f32 0.0, %v1733
        %1735 = vdwg.mxu0
        %1736 = vrot.lane.b32.xlu0 %v738, 96
        %v1737 = vpop.permute.xlu0 %1736
        %1738 = vrot.lane.b32.xlu0 %v741, 96
        %v1739 = vpop.permute.xlu0 %1738
        %v1743 = vsel %vm747, %v1648, 0
        %1745 = vmatpush.msra.mxu0 0.0
        %1746 = vmatpush.msra.mxu0 0.0
        %1747 = vmatpush.msra.mxu0 0.0
        %1748 = vmatpush.msra.mxu0 0.0
        %1749 = vmatpush.msra.mxu0 0.0
        %1750 = vmatpush.msra.mxu0 0.0
        %1751 = vmatpush.msra.mxu0 0.0
        %1752 = vmatpush.msra.mxu0 0.0
        %1753 = vmatpush.msra.mxu0 0.0
        %1754 = vmatpush.msra.mxu0 0.0
        %1755 = vmatpush.msra.mxu0 0.0
        %1756 = vmatpush.msra.mxu0 0.0
        %1757 = vmatpush.msra.mxu0 0.0
        %1758 = vmatpush.msra.mxu0 0.0
        %1759 = vmatpush.msra.mxu0 %v1739
        %1760 = vmatpush.msra.mxu0 %v1737
        %1761 = vmatmul.f32.gmra.mxu0 %v1743
        %v1762 = vpop.f32.mrf.mxu0
        %v1763 = vadd.f32 0.0, %v1762
        %1764 = vdwg.mxu0
        %1769 = vrot.lane.b32.xlu0 %v1676, 32
        %v1770 = vpop.permute.xlu0 %1769
        %1771 = vrot.lane.b32.xlu0 %v1705, 32
        %v1772 = vpop.permute.xlu0 %1771
        %1773 = vrot.lane.b32.xlu0 %v1734, 32
        %v1774 = vpop.permute.xlu0 %1773
        %1775 = vrot.lane.b32.xlu0 %v1763, 32
        %v1776 = vpop.permute.xlu0 %1775
        %vm1781 = vcmask 392448
        %1782 = vst.msk [vmem:[#allocation2] sm:$0xff] %vm1781, %v1770
        %1783 = vst.msk [vmem:[#allocation2 + $0x8] sm:$0xff] %vm1781, %v1772
        %1784 = vst.msk [vmem:[#allocation2 + $0x10] sm:$0xff] %vm1781, %v1774
        %1785 = vst.msk [vmem:[#allocation2 + $0x18] sm:$0xff] %vm1781, %v1776
        %1786 = vrot.lane.b32.xlu0 %v743, 80
        %v1787 = vpop.permute.xlu0 %1786
        %1788 = vrot.lane.b32.xlu0 %v602, 80
        %v1789 = vpop.permute.xlu0 %1788
        %1790 = vrot.lane.b32.xlu0 %v605, 80
        %v1791 = vpop.permute.xlu0 %1790
        %v1792 = vsel %vm747, %v1787, 0
        %v1794 = vsel %vm747, %v1789, 0
        %v1796 = vsel %vm747, %v1791, 0
        %1798 = vmatpush.xpose.msra.mxu0 0.0
        %1799 = vmatpush.xpose.msra.mxu0 0.0
        %1800 = vmatpush.xpose.msra.mxu0 0.0
        %1801 = vmatpush.xpose.msra.mxu0 0.0
        %1802 = vmatpush.xpose.msra.mxu0 0.0
        %1803 = vmatpush.xpose.msra.mxu0 0.0
        %1804 = vmatpush.xpose.msra.mxu0 0.0
        %1805 = vmatpush.xpose.msra.mxu0 0.0
        %1806 = vmatpush.xpose.msra.mxu0 0.0
        %1807 = vmatpush.xpose.msra.mxu0 0.0
        %1808 = vmatpush.xpose.msra.mxu0 0.0
        %1809 = vmatpush.xpose.msra.mxu0 0.0
        %1810 = vmatpush.xpose.msra.mxu0 0.0
        %1811 = vmatpush.xpose.msra.mxu0 0.0
        %1812 = vmatpush.xpose.msra.mxu0 %v1796
        %1813 = vmatpush.xpose.msra.mxu0 %v1794
        %1814 = vmatmul.f32.gmra.mxu0 %v1792
        %v1815 = vpop.f32.mrf.mxu0
        %v1816 = vadd.f32 0.0, %v1815
        %1817 = vdwg.mxu0
        %1818 = vrot.lane.b32.xlu0 %v744, 80
        %v1819 = vpop.permute.xlu0 %1818
        %1820 = vrot.lane.b32.xlu0 %v608, 80
        %v1821 = vpop.permute.xlu0 %1820
        %1822 = vrot.lane.b32.xlu0 %v611, 80
        %v1823 = vpop.permute.xlu0 %1822
        %v1824 = vsel %vm747, %v1819, 0
        %v1826 = vsel %vm747, %v1821, 0
        %v1828 = vsel %vm747, %v1823, 0
        %1830 = vmatpush.xpose.msra.mxu0 0.0
        %1831 = vmatpush.xpose.msra.mxu0 0.0
        %1832 = vmatpush.xpose.msra.mxu0 0.0
        %1833 = vmatpush.xpose.msra.mxu0 0.0
        %1834 = vmatpush.xpose.msra.mxu0 0.0
        %1835 = vmatpush.xpose.msra.mxu0 0.0
        %1836 = vmatpush.xpose.msra.mxu0 0.0
        %1837 = vmatpush.xpose.msra.mxu0 0.0
        %1838 = vmatpush.xpose.msra.mxu0 0.0
        %1839 = vmatpush.xpose.msra.mxu0 0.0
        %1840 = vmatpush.xpose.msra.mxu0 0.0
        %1841 = vmatpush.xpose.msra.mxu0 0.0
        %1842 = vmatpush.xpose.msra.mxu0 0.0
        %1843 = vmatpush.xpose.msra.mxu0 0.0
        %1844 = vmatpush.xpose.msra.mxu0 %v1828
        %1845 = vmatpush.xpose.msra.mxu0 %v1826
        %1846 = vmatmul.f32.gmra.mxu0 %v1824
        %v1847 = vpop.f32.mrf.mxu0
        %v1848 = vadd.f32 0.0, %v1847
        %1849 = vdwg.mxu0
        %1850 = vrot.lane.b32.xlu0 %v745, 80
        %v1851 = vpop.permute.xlu0 %1850
        %1852 = vrot.lane.b32.xlu0 %v614, 80
        %v1853 = vpop.permute.xlu0 %1852
        %1854 = vrot.lane.b32.xlu0 %v617, 80
        %v1855 = vpop.permute.xlu0 %1854
        %v1856 = vsel %vm747, %v1851, 0
        %v1858 = vsel %vm747, %v1853, 0
        %v1860 = vsel %vm747, %v1855, 0
        %1862 = vmatpush.xpose.msra.mxu0 0.0
        %1863 = vmatpush.xpose.msra.mxu0 0.0
        %1864 = vmatpush.xpose.msra.mxu0 0.0
        %1865 = vmatpush.xpose.msra.mxu0 0.0
        %1866 = vmatpush.xpose.msra.mxu0 0.0
        %1867 = vmatpush.xpose.msra.mxu0 0.0
        %1868 = vmatpush.xpose.msra.mxu0 0.0
        %1869 = vmatpush.xpose.msra.mxu0 0.0
        %1870 = vmatpush.xpose.msra.mxu0 0.0
        %1871 = vmatpush.xpose.msra.mxu0 0.0
        %1872 = vmatpush.xpose.msra.mxu0 0.0
        %1873 = vmatpush.xpose.msra.mxu0 0.0
        %1874 = vmatpush.xpose.msra.mxu0 0.0
        %1875 = vmatpush.xpose.msra.mxu0 0.0
        %1876 = vmatpush.xpose.msra.mxu0 %v1860
        %1877 = vmatpush.xpose.msra.mxu0 %v1858
        %1878 = vmatmul.f32.gmra.mxu0 %v1856
        %v1879 = vpop.f32.mrf.mxu0
        %v1880 = vadd.f32 0.0, %v1879
        %1881 = vdwg.mxu0
        %1882 = vrot.lane.b32.xlu0 %v746, 80
        %v1883 = vpop.permute.xlu0 %1882
        %1884 = vrot.lane.b32.xlu0 %v620, 80
        %v1885 = vpop.permute.xlu0 %1884
        %1886 = vrot.lane.b32.xlu0 %v623, 80
        %v1887 = vpop.permute.xlu0 %1886
        %v1888 = vsel %vm747, %v1883, 0
        %v1890 = vsel %vm747, %v1885, 0
        %v1892 = vsel %vm747, %v1887, 0
        %1894 = vmatpush.xpose.msra.mxu0 0.0
        %1895 = vmatpush.xpose.msra.mxu0 0.0
        %1896 = vmatpush.xpose.msra.mxu0 0.0
        %1897 = vmatpush.xpose.msra.mxu0 0.0
        %1898 = vmatpush.xpose.msra.mxu0 0.0
        %1899 = vmatpush.xpose.msra.mxu0 0.0
        %1900 = vmatpush.xpose.msra.mxu0 0.0
        %1901 = vmatpush.xpose.msra.mxu0 0.0
        %1902 = vmatpush.xpose.msra.mxu0 0.0
        %1903 = vmatpush.xpose.msra.mxu0 0.0
        %1904 = vmatpush.xpose.msra.mxu0 0.0
        %1905 = vmatpush.xpose.msra.mxu0 0.0
        %1906 = vmatpush.xpose.msra.mxu0 0.0
        %1907 = vmatpush.xpose.msra.mxu0 0.0
        %1908 = vmatpush.xpose.msra.mxu0 %v1892
        %1909 = vmatpush.xpose.msra.mxu0 %v1890
        %1910 = vmatmul.f32.gmra.mxu0 %v1888
        %v1911 = vpop.f32.mrf.mxu0
        %v1912 = vadd.f32 0.0, %v1911
        %1913 = vdwg.mxu0
        %v1914 = vsel %vm747, %v1816, -inf
        %1915 = vmax.xlane.f32.xlu0 %v1914
        %v1916 = vpop.xlane.xlu0 %1915
        %v1917 = vsel %vm747, %v1848, -inf
        %1918 = vmax.xlane.f32.xlu0 %v1917
        %v1919 = vpop.xlane.xlu0 %1918
        %v1920 = vsel %vm747, %v1880, -inf
        %1921 = vmax.xlane.f32.xlu0 %v1920
        %v1922 = vpop.xlane.xlu0 %1921
        %v1923 = vsel %vm747, %v1912, -inf
        %1924 = vmax.xlane.f32.xlu0 %v1923
        %v1925 = vpop.xlane.xlu0 %1924
        %v1926 = vsub.f32 %v1816, %v1916
        %v1927 = vsub.f32 %v1848, %v1919
        %v1928 = vsub.f32 %v1880, %v1922
        %v1929 = vsub.f32 %v1912, %v1925
        %v1930 = vmul.f32 %v1926, 1.442695
        %v1931 = vpow.pop %v1930
        %v1932 = vmul.f32 %v1927, 1.442695
        %v1933 = vpow.pop %v1932
        %v1934 = vmul.f32 %v1928, 1.442695
        %v1935 = vpow.pop %v1934
        %v1936 = vmul.f32 %v1929, 1.442695
        %v1937 = vpow.pop %v1936
        %v1938 = vsel %vm747, %v1931, 0.0
        %1939 = vadd.xlane.f32.xlu0 %v1938
        %v1940 = vpop.xlane.xlu0 %1939
        %v1941 = vsel %vm747, %v1933, 0.0
        %1942 = vadd.xlane.f32.xlu0 %v1941
        %v1943 = vpop.xlane.xlu0 %1942
        %v1944 = vsel %vm747, %v1935, 0.0
        %1945 = vadd.xlane.f32.xlu0 %v1944
        %v1946 = vpop.xlane.xlu0 %1945
        %v1947 = vsel %vm747, %v1937, 0.0
        %1948 = vadd.xlane.f32.xlu0 %v1947
        %v1949 = vpop.xlane.xlu0 %1948
        %v1950 = vrcp.pop %v1940
        %v1951 = vmul.f32 %v1940, %v1950
        %v1952 = vsub.f32 1.0, %v1951
        %v1953 = vmul.f32 %v1950, %v1952
        %v1954 = vadd.f32 %v1950, %v1953
        %vm1955 = vweird.f32 %v1940
        %vm1956 = vweird.f32 %v1950
        %vm1957 = vmor %vm1955, %vm1956
        %v1958 = vsel %vm1957, %v1950, %v1954
        %v1959 = vand.u32 2147483647, %v1940
        %vm1960 = vcmp.eq.f32.partialorder %v1959, 8.507059e+37
        %v1961 = vand.u32 %v1940, 2147483648
        %v1962 = vor.u32 1.1754944e-38, %v1961
        %v1963 = vsel %vm1960, %v1962, %v1958
        %v1964 = vrcp.pop %v1943
        %v1965 = vmul.f32 %v1943, %v1964
        %v1966 = vsub.f32 1.0, %v1965
        %v1967 = vmul.f32 %v1964, %v1966
        %v1968 = vadd.f32 %v1964, %v1967
        %vm1969 = vweird.f32 %v1943
        %vm1970 = vweird.f32 %v1964
        %vm1971 = vmor %vm1969, %vm1970
        %v1972 = vsel %vm1971, %v1964, %v1968
        %v1973 = vand.u32 2147483647, %v1943
        %vm1974 = vcmp.eq.f32.partialorder %v1973, 8.507059e+37
        %v1975 = vand.u32 %v1943, 2147483648
        %v1976 = vor.u32 1.1754944e-38, %v1975
        %v1977 = vsel %vm1974, %v1976, %v1972
        %v1978 = vrcp.pop %v1946
        %v1979 = vmul.f32 %v1946, %v1978
        %v1980 = vsub.f32 1.0, %v1979
        %v1981 = vmul.f32 %v1978, %v1980
        %v1982 = vadd.f32 %v1978, %v1981
        %vm1983 = vweird.f32 %v1946
        %vm1984 = vweird.f32 %v1978
        %vm1985 = vmor %vm1983, %vm1984
        %v1986 = vsel %vm1985, %v1978, %v1982
        %v1987 = vand.u32 2147483647, %v1946
        %vm1988 = vcmp.eq.f32.partialorder %v1987, 8.507059e+37
        %v1989 = vand.u32 %v1946, 2147483648
        %v1990 = vor.u32 1.1754944e-38, %v1989
        %v1991 = vsel %vm1988, %v1990, %v1986
        %v1992 = vrcp.pop %v1949
        %v1993 = vmul.f32 %v1949, %v1992
        %v1994 = vsub.f32 1.0, %v1993
        %v1995 = vmul.f32 %v1992, %v1994
        %v1996 = vadd.f32 %v1992, %v1995
        %vm1997 = vweird.f32 %v1949
        %vm1998 = vweird.f32 %v1992
        %vm1999 = vmor %vm1997, %vm1998
        %v2000 = vsel %vm1999, %v1992, %v1996
        %v2001 = vand.u32 2147483647, %v1949
        %vm2002 = vcmp.eq.f32.partialorder %v2001, 8.507059e+37
        %v2003 = vand.u32 %v1949, 2147483648
        %v2004 = vor.u32 1.1754944e-38, %v2003
        %v2005 = vsel %vm2002, %v2004, %v2000
        %v2006 = vmul.f32 %v1931, %v1963
        %v2007 = vmul.f32 %v1933, %v1977
        %v2008 = vmul.f32 %v1935, %v1991
        %v2009 = vmul.f32 %v1937, %v2005
        %2010 = vrot.lane.b32.xlu0 %v720, 80
        %v2011 = vpop.permute.xlu0 %2010
        %2012 = vrot.lane.b32.xlu0 %v723, 80
        %v2013 = vpop.permute.xlu0 %2012
        %v2017 = vsel %vm747, %v2006, 0
        %2019 = vmatpush.msra.mxu0 0.0
        %2020 = vmatpush.msra.mxu0 0.0
        %2021 = vmatpush.msra.mxu0 0.0
        %2022 = vmatpush.msra.mxu0 0.0
        %2023 = vmatpush.msra.mxu0 0.0
        %2024 = vmatpush.msra.mxu0 0.0
        %2025 = vmatpush.msra.mxu0 0.0
        %2026 = vmatpush.msra.mxu0 0.0
        %2027 = vmatpush.msra.mxu0 0.0
        %2028 = vmatpush.msra.mxu0 0.0
        %2029 = vmatpush.msra.mxu0 0.0
        %2030 = vmatpush.msra.mxu0 0.0
        %2031 = vmatpush.msra.mxu0 0.0
        %2032 = vmatpush.msra.mxu0 0.0
        %2033 = vmatpush.msra.mxu0 %v2013
        %2034 = vmatpush.msra.mxu0 %v2011
        %2035 = vmatmul.f32.gmra.mxu0 %v2017
        %v2036 = vpop.f32.mrf.mxu0
        %v2037 = vadd.f32 0.0, %v2036
        %2038 = vdwg.mxu0
        %2039 = vrot.lane.b32.xlu0 %v726, 80
        %v2040 = vpop.permute.xlu0 %2039
        %2041 = vrot.lane.b32.xlu0 %v729, 80
        %v2042 = vpop.permute.xlu0 %2041
        %v2046 = vsel %vm747, %v2007, 0
        %2048 = vmatpush.msra.mxu0 0.0
        %2049 = vmatpush.msra.mxu0 0.0
        %2050 = vmatpush.msra.mxu0 0.0
        %2051 = vmatpush.msra.mxu0 0.0
        %2052 = vmatpush.msra.mxu0 0.0
        %2053 = vmatpush.msra.mxu0 0.0
        %2054 = vmatpush.msra.mxu0 0.0
        %2055 = vmatpush.msra.mxu0 0.0
        %2056 = vmatpush.msra.mxu0 0.0
        %2057 = vmatpush.msra.mxu0 0.0
        %2058 = vmatpush.msra.mxu0 0.0
        %2059 = vmatpush.msra.mxu0 0.0
        %2060 = vmatpush.msra.mxu0 0.0
        %2061 = vmatpush.msra.mxu0 0.0
        %2062 = vmatpush.msra.mxu0 %v2042
        %2063 = vmatpush.msra.mxu0 %v2040
        %2064 = vmatmul.f32.gmra.mxu0 %v2046
        %v2065 = vpop.f32.mrf.mxu0
        %v2066 = vadd.f32 0.0, %v2065
        %2067 = vdwg.mxu0
        %2068 = vrot.lane.b32.xlu0 %v732, 80
        %v2069 = vpop.permute.xlu0 %2068
        %2070 = vrot.lane.b32.xlu0 %v735, 80
        %v2071 = vpop.permute.xlu0 %2070
        %v2075 = vsel %vm747, %v2008, 0
        %2077 = vmatpush.msra.mxu0 0.0
        %2078 = vmatpush.msra.mxu0 0.0
        %2079 = vmatpush.msra.mxu0 0.0
        %2080 = vmatpush.msra.mxu0 0.0
        %2081 = vmatpush.msra.mxu0 0.0
        %2082 = vmatpush.msra.mxu0 0.0
        %2083 = vmatpush.msra.mxu0 0.0
        %2084 = vmatpush.msra.mxu0 0.0
        %2085 = vmatpush.msra.mxu0 0.0
        %2086 = vmatpush.msra.mxu0 0.0
        %2087 = vmatpush.msra.mxu0 0.0
        %2088 = vmatpush.msra.mxu0 0.0
        %2089 = vmatpush.msra.mxu0 0.0
        %2090 = vmatpush.msra.mxu0 0.0
        %2091 = vmatpush.msra.mxu0 %v2071
        %2092 = vmatpush.msra.mxu0 %v2069
        %2093 = vmatmul.f32.gmra.mxu0 %v2075
        %v2094 = vpop.f32.mrf.mxu0
        %v2095 = vadd.f32 0.0, %v2094
        %2096 = vdwg.mxu0
        %2097 = vrot.lane.b32.xlu0 %v738, 80
        %v2098 = vpop.permute.xlu0 %2097
        %2099 = vrot.lane.b32.xlu0 %v741, 80
        %v2100 = vpop.permute.xlu0 %2099
        %v2104 = vsel %vm747, %v2009, 0
        %2106 = vmatpush.msra.mxu0 0.0
        %2107 = vmatpush.msra.mxu0 0.0
        %2108 = vmatpush.msra.mxu0 0.0
        %2109 = vmatpush.msra.mxu0 0.0
        %2110 = vmatpush.msra.mxu0 0.0
        %2111 = vmatpush.msra.mxu0 0.0
        %2112 = vmatpush.msra.mxu0 0.0
        %2113 = vmatpush.msra.mxu0 0.0
        %2114 = vmatpush.msra.mxu0 0.0
        %2115 = vmatpush.msra.mxu0 0.0
        %2116 = vmatpush.msra.mxu0 0.0
        %2117 = vmatpush.msra.mxu0 0.0
        %2118 = vmatpush.msra.mxu0 0.0
        %2119 = vmatpush.msra.mxu0 0.0
        %2120 = vmatpush.msra.mxu0 %v2100
        %2121 = vmatpush.msra.mxu0 %v2098
        %2122 = vmatmul.f32.gmra.mxu0 %v2104
        %v2123 = vpop.f32.mrf.mxu0
        %v2124 = vadd.f32 0.0, %v2123
        %2125 = vdwg.mxu0
        %2130 = vrot.lane.b32.xlu0 %v2037, 48
        %v2131 = vpop.permute.xlu0 %2130
        %2132 = vrot.lane.b32.xlu0 %v2066, 48
        %v2133 = vpop.permute.xlu0 %2132
        %2134 = vrot.lane.b32.xlu0 %v2095, 48
        %v2135 = vpop.permute.xlu0 %2134
        %2136 = vrot.lane.b32.xlu0 %v2124, 48
        %v2137 = vpop.permute.xlu0 %2136
        %vm2142 = vcmask 523648
        %2143 = vst.msk [vmem:[#allocation2] sm:$0xff] %vm2142, %v2131
        %2144 = vst.msk [vmem:[#allocation2 + $0x8] sm:$0xff] %vm2142, %v2133
        %2145 = vst.msk [vmem:[#allocation2 + $0x10] sm:$0xff] %vm2142, %v2135
        %2146 = vst.msk [vmem:[#allocation2 + $0x18] sm:$0xff] %vm2142, %v2137
        %v2147 = vld [vmem:[#allocation2] sm:$0xff]
        %v2148 = vld [vmem:[#allocation2 + $0x8] sm:$0xff]
        %v2149 = vld [vmem:[#allocation2 + $0x10] sm:$0xff]
        %v2150 = vld [vmem:[#allocation2 + $0x18] sm:$0xff]
        %v2151 = vld [vmem:[%s8] sm:$0xff]
        %v2152 = vld [vmem:[%s8 + $0x8] sm:$0xff]
        %v2153 = vld [vmem:[%s8 + $0x10] sm:$0xff]
        %v2154 = vld [vmem:[%s8 + $0x18] sm:$0xff]
        %v2155 = vld [vmem:[%s8 + $0x20] sm:$0xff]
        %v2156 = vld [vmem:[%s8 + $0x28] sm:$0xff]
        %v2157 = vld [vmem:[%s8 + $0x30] sm:$0xff]
        %v2158 = vld [vmem:[%s8 + $0x38] sm:$0xff]
        %v2159 = vld [vmem:[%s8 + $0x40] sm:$0xff]
        %v2160 = vld [vmem:[%s8 + $0x48] sm:$0xff]
        %v2161 = vld [vmem:[%s8 + $0x50] sm:$0xff]
        %v2162 = vld [vmem:[%s8 + $0x58] sm:$0xff]
        %v2163 = vld [vmem:[%s8 + $0x60] sm:$0xff]
        %v2164 = vld [vmem:[%s8 + $0x68] sm:$0xff]
        %v2165 = vld [vmem:[%s8 + $0x70] sm:$0xff]
        %v2166 = vld [vmem:[%s8 + $0x78] sm:$0xff]
        %v2167 = vld [vmem:[%s9] sm:$0x3]
        %v2169 = vperm.slane %v2167, 0
        %v2170 = vperm.slane %v2167, 1
        %vm2173 = vcmask 523264
        %v2175 = vsel %vm2173, %v2147, 0
        %v2178 = vsel %vm2173, %v2148, 0
        %v2181 = vsel %vm2173, %v2149, 0
        %v2184 = vsel %vm2173, %v2150, 0
        %2186 = vmatpush.msra.mxu0 0.0
        %2187 = vmatpush.msra.mxu0 0.0
        %2188 = vmatpush.msra.mxu0 0.0
        %2189 = vmatpush.msra.mxu0 0.0
        %2190 = vmatpush.msra.mxu0 0.0
        %2191 = vmatpush.msra.mxu0 0.0
        %2192 = vmatpush.msra.mxu0 0.0
        %2193 = vmatpush.msra.mxu0 0.0
        %2194 = vmatpush.msra.mxu0 %v2165
        %2195 = vmatpush.msra.mxu0 %v2163
        %2196 = vmatpush.msra.mxu0 %v2161
        %2197 = vmatpush.msra.mxu0 %v2159
        %2198 = vmatpush.msra.mxu0 %v2157
        %2199 = vmatpush.msra.mxu0 %v2155
        %2200 = vmatpush.msra.mxu0 %v2153
        %2201 = vmatpush.msra.mxu0 %v2151
        %2202 = vmatmul.f32.gmra.mxu0 %v2175
        %v2203 = vpop.f32.mrf.mxu0
        %v2204 = vadd.f32 %v2169, %v2203
        %2205 = vmatmul.f32.gmra.mxu0 %v2178
        %v2206 = vpop.f32.mrf.mxu0
        %v2207 = vadd.f32 %v2169, %v2206
        %2208 = vmatmul.f32.gmra.mxu0 %v2181
        %v2209 = vpop.f32.mrf.mxu0
        %v2210 = vadd.f32 %v2169, %v2209
        %2211 = vmatmul.f32.gmra.mxu0 %v2184
        %v2212 = vpop.f32.mrf.mxu0
        %v2213 = vadd.f32 %v2169, %v2212
        %2214 = vdwg.mxu0
        %2215 = vmatpush.msra.mxu0 0.0
        %2216 = vmatpush.msra.mxu0 0.0
        %2217 = vmatpush.msra.mxu0 0.0
        %2218 = vmatpush.msra.mxu0 0.0
        %2219 = vmatpush.msra.mxu0 0.0
        %2220 = vmatpush.msra.mxu0 0.0
        %2221 = vmatpush.msra.mxu0 0.0
        %2222 = vmatpush.msra.mxu0 0.0
        %2223 = vmatpush.msra.mxu0 %v2166
        %2224 = vmatpush.msra.mxu0 %v2164
        %2225 = vmatpush.msra.mxu0 %v2162
        %2226 = vmatpush.msra.mxu0 %v2160
        %2227 = vmatpush.msra.mxu0 %v2158
        %2228 = vmatpush.msra.mxu0 %v2156
        %2229 = vmatpush.msra.mxu0 %v2154
        %2230 = vmatpush.msra.mxu0 %v2152
        %2231 = vmatmul.f32.gmra.mxu0 %v2175
        %v2232 = vpop.f32.mrf.mxu0
        %v2233 = vadd.f32 %v2170, %v2232
        %2234 = vmatmul.f32.gmra.mxu0 %v2178
        %v2235 = vpop.f32.mrf.mxu0
        %v2236 = vadd.f32 %v2170, %v2235
        %2237 = vmatmul.f32.gmra.mxu0 %v2181
        %v2238 = vpop.f32.mrf.mxu0
        %v2239 = vadd.f32 %v2170, %v2238
        %2240 = vmatmul.f32.gmra.mxu0 %v2184
        %v2241 = vpop.f32.mrf.mxu0
        %v2242 = vadd.f32 %v2170, %v2241
        %2243 = vdwg.mxu0
        %2244 = vst [vmem:[%s373] sm:$0xff] %v2204
        %2245 = vst [vmem:[%s373 + $0x8] sm:$0xff] %v2233
        %2246 = vst [vmem:[%s373 + $0x10] sm:$0xff] %v2207
        %2247 = vst [vmem:[%s373 + $0x18] sm:$0xff] %v2236
        %2248 = vst [vmem:[%s373 + $0x20] sm:$0xff] %v2210
        %2249 = vst [vmem:[%s373 + $0x28] sm:$0xff] %v2239
        %2250 = vst [vmem:[%s373 + $0x30] sm:$0xff] %v2213
        %2251 = vst [vmem:[%s373 + $0x38] sm:$0xff] %v2242
        %s2252 = sand.u32 %s252, 1
        %s2253 = scalar_lea.sflag [#allocation4], %s2252
        %s2254 = sand.u32 %s252, 1
        %s2255 = smul.addr %s2254, 64
        %s2256 = scalar_lea.vmem [#allocation3], %s2255
        // Predicated region
        $region61: #{tpu_custom_call.1} parent=59 // pred_check
          %p2257 = pneg %p262
        $region62: #{tpu_custom_call.1} parent=59 // pred_check_branch
          %2259 = sbr.rel (%p2257) target = $region64
        $region63: #{tpu_custom_call.1} parent=59 // pred_region
          %s2260 = smul.u32 4, %s24
          %2262 = vsyncadd %s2253, 0
          %s2263 = smul.addr %s2260, 2
          %s2264 = smul.addr %s2263, 8
          %s2265 = scalar_lea.hbm %s10, %s2264
          %s2266 = sshll.u32 %s2256, 4
          %s2267 = int_to_ptr.vmem [resolvable:$true] %s2266
          %s2268 = sshll.u32 %s2265, 4
          %s2269 = int_to_ptr.hbm [resolvable:$true] %s2268
          %2274 = dma.vmem_to_hbm [thread:$0]  %s2267, 1024, %s2269, %s2253, 256, 256, 16
        $region64: #{tpu_custom_call.1} parent=59 // pred_fallthru
          _
      $region60: #{tpu_custom_call.1} parent=5 // pred_fallthru
        _
      %p2275 = scmp.le.s32.totalorder 2, %s19
      // Predicated region
      $region65: #{tpu_custom_call.1} parent=5 // pred_check
        %p2276 = pneg %p2275
      $region66: #{tpu_custom_call.1} parent=5 // pred_check_branch
        %2278 = sbr.rel (%p2276) target = $region68
      $region67: #{tpu_custom_call.1} parent=5 // pred_region
        %s2279 = ssub.s32 %s19, 2
        // Predicated region
        $region69: #{tpu_custom_call.1} parent=67 // pred_check
          %p2280 = pneg %p268
        $region70: #{tpu_custom_call.1} parent=67 // pred_check_branch
          %2282 = sbr.rel (%p2280) target = $region72
        $region71: #{tpu_custom_call.1} parent=67 // pred_region
          %s2283 = sand.u32 %s253, 1
          %s2284 = scalar_lea.sflag [#allocation4], %s2283
          %s2285 = sand.u32 %s253, 1
          %s2286 = smul.addr %s2285, 64
          %s2287 = scalar_lea.vmem [#allocation3], %s2286
          %2289 = dma.done %s2284, 1024
        $region72: #{tpu_custom_call.1} parent=67 // pred_fallthru
          _
      $region68: #{tpu_custom_call.1} parent=5 // pred_fallthru
        _
    $region6: #{tpu_custom_call.1} parent=1 // loop_footer
      %s23 = sadd.s32 1, %s19
    $region7: #{tpu_custom_call.1} parent=1 // loop_footer_branch
      %18 = sbr.rel target = $region3
    $region8: #{tpu_custom_call.1} parent=1 // loop_exit
      _
    %2290 = vsyncpa [#allocation4], 1
    %s2291 = scalar_lea.sflag [#allocation4], 1
    %2292 = vsyncpa %s2291, 1

</llo_original>
